<compile_context>
chip_gen: v5e
topology: v5e:2x2
jax: 0.10.0
libtpu: 0.0.40
codegen_flags: <defaults>
</compile_context>

<pallas_src>
from functools import partial

import jax
import jax.numpy as jnp
from jax import lax
from jax.experimental import pallas as pl
from jax.experimental.pallas import tpu as pltpu

_LANE = 128
_VMEM_LIMIT = 48 * 1024 * 1024      # above v5e/v6e scoped defaults, fits v7x 64 MiB


def _round_up(c, m=_LANE):
    return ((c + m - 1) // m) * m


def _sigmoid(v):
    # exp + approximate reciprocal both run on the EUP slot -> frees VALU slots.
    return pl.reciprocal(1.0 + jnp.exp(-v), approx=True)


# ---------------------------------------------------------------------------
# Kernel A: expand 3x3 conv (tap-fused) + BN1 + SiLU, plus per-tile channel
# sums for the SE global average pool.   grid = (batch, row_tile).
# ---------------------------------------------------------------------------
def _expand_kernel(xq_ref, w_exp_ref, vec_ref, y_ref, psum_ref, *, stride, hq):
    _, th, wo, cexp = y_ref.shape
    row0 = pl.program_id(1) * th
    if th % 8 == 0:
        row0 = pl.multiple_of(row0, 8)

    # Gather the 9 taps as contiguous slices of the (phase-decomposed) input
    # and fuse them along the channel axis -> one (th*wo, 9*Cin_p) operand.
    taps = []
    slab_cache = {}
    for kh in range(3):
        for kw in range(3):
            p = (kh % stride) * stride + (kw % stride)       # static phase id
            oh, ow = kh // stride, kw // stride              # static offsets
            key = (p, oh)
            if key not in slab_cache:
                slab_cache[key] = xq_ref[0, pl.ds(p * hq + row0 + oh, th)]
            taps.append(slab_cache[key][:, ow:ow + wo, :])
    patch = jnp.concatenate(taps, axis=-1).reshape(th * wo, -1)   # bf16

    acc = jnp.dot(patch, w_exp_ref[...], preferred_element_type=jnp.float32)

    bn1_s = vec_ref[pl.ds(0, 1), pl.ds(0, cexp)]
    bn1_b = vec_ref[pl.ds(1, 1), pl.ds(0, cexp)]
    y = acc * bn1_s + bn1_b
    y = y * _sigmoid(y)                                           # SiLU, f32

    psum_ref[...] = jnp.sum(y, axis=0, keepdims=True).reshape(1, 1, 1, cexp)
    y_ref[...] = y.reshape(1, th, wo, cexp).astype(y_ref.dtype)


# ---------------------------------------------------------------------------
# Kernel B: SE (pool -> FC -> SiLU -> FC -> sigmoid -> scale) + 1x1 project
# conv + BN2 + SiLU (+ residual).   grid = (batch, row_tile).
# ---------------------------------------------------------------------------
def _project_kernel(y_ref, psum_ref, w_se1_ref, w_se2_ref, w_proj_ref, vec_ref,
                    *rest, shortcut, inv_area):
    if shortcut:
        x_ref, out_ref = rest
    else:
        (out_ref,) = rest
    _, th, wo, cexp = y_ref.shape
    csq = w_se1_ref.shape[1]
    cout = w_proj_ref.shape[1]

    # Global average pool from the per-tile partial sums (f32).
    ps = psum_ref[0]                                        # (R, 1, cexp)
    pooled = jnp.sum(ps, axis=0) * inv_area                 # (1, cexp)

    b_se1 = vec_ref[pl.ds(2, 1), pl.ds(0, csq)]
    b_se2 = vec_ref[pl.ds(3, 1), pl.ds(0, cexp)]
    bn2_s = vec_ref[pl.ds(4, 1), pl.ds(0, cout)]
    bn2_b = vec_ref[pl.ds(5, 1), pl.ds(0, cout)]

    s = jnp.dot(pooled, w_se1_ref[...], preferred_element_type=jnp.float32) + b_se1
    s = s * _sigmoid(s)
    s = jnp.dot(s, w_se2_ref[...], preferred_element_type=jnp.float32) + b_se2
    s = _sigmoid(s)                                         # (1, cexp)

    y = y_ref[0].reshape(th * wo, cexp).astype(jnp.float32) * s
    z = jnp.dot(y.astype(jnp.bfloat16), w_proj_ref[...],
                preferred_element_type=jnp.float32)
    z = z * bn2_s + bn2_b
    z = z * _sigmoid(z)                                     # SiLU

    if shortcut:
        z = z + x_ref[0].reshape(th * wo, cout).astype(jnp.float32)

    out_ref[...] = z.reshape(1, th, wo, cout).astype(out_ref.dtype)


# ---------------------------------------------------------------------------
# Wrapper: layout plumbing (NCHW<->NHWC, pad, phase split, channel pad, bf16),
# row tiling and the two pallas_calls.
# ---------------------------------------------------------------------------
def fused_mbconv(x_nchw, params, stride: int, *, tile_h=None):
    N, Cin, H, W = x_nchw.shape
    Cexp = params["w_exp"].shape[-1]
    Csq = params["w_se1"].shape[-1]
    Cout = params["w_proj"].shape[-1]
    Ho = (H + 2 - 3) // stride + 1
    Wo = (W + 2 - 3) // stride + 1
    shortcut = stride == 1
    if shortcut:
        assert Cin == Cout, "shortcut requires matching channel count"

    Cin_p, Cexp_p, Csq_p, Cout_p = map(_round_up, (Cin, Cexp, Csq, Cout))
    Cmax = max(Cexp_p, Csq_p, Cout_p)

    # ---- input prep (transpose + 1px halo pad + channel pad + bf16 cast,
    #      fused by XLA into one copy under jit) --------------------------------
    # TODO(synk): the 1px halo pad could be built in-kernel (manual DMA into a
    # zero-initialised VMEM slab) to avoid one HBM round trip of the input.
    x_nhwc = jnp.transpose(x_nchw, (0, 2, 3, 1))
    xpad = jnp.pad(x_nhwc, ((0, 0), (1, 1), (1, 1), (0, Cin_p - Cin))
                   ).astype(jnp.bfloat16)

    if stride == 1:
        P, Hq, Wq = 1, H + 2, W + 2
        xq = xpad                                           # (N, Hq, Wq, Cin_p)
    else:
        # Space-to-depth phase split: stride-s taps become contiguous slices.
        P = stride * stride
        Hq = Ho + 2 // stride
        Wq = Wo + 2 // stride
        phases = []
        for pr in range(stride):
            for pc in range(stride):
                ph = xpad[:, pr::stride, pc::stride, :][:, :Hq, :Wq, :]
                ph = jnp.pad(ph, ((0, 0), (0, Hq - ph.shape[1]),
                                  (0, Wq - ph.shape[2]), (0, 0)))
                phases.append(ph)
        xq = jnp.concatenate(phases, axis=1)                # (N, P*Hq, Wq, Cin_p)

    # ---- weights: tap-fused expand conv, channel padded, bf16 MXU operands ----
    w_exp = params["w_exp"].reshape(9, Cin, Cexp)
    w_exp = jnp.pad(w_exp, ((0, 0), (0, Cin_p - Cin), (0, Cexp_p - Cexp)))
    w_exp = w_exp.reshape(9 * Cin_p, Cexp_p).astype(jnp.bfloat16)
    w_se1 = jnp.pad(params["w_se1"], ((0, Cexp_p - Cexp), (0, Csq_p - Csq))
                    ).astype(jnp.float32)
    w_se2 = jnp.pad(params["w_se2"], ((0, Csq_p - Csq), (0, Cexp_p - Cexp))
                    ).astype(jnp.float32)
    w_proj = jnp.pad(params["w_proj"], ((0, Cexp_p - Cexp), (0, Cout_p - Cout))
                     ).astype(jnp.bfloat16)

    # ---- pack the six (C,) scale/bias vectors into one (8, Cmax) slab ---------
    def _row(v):
        return jnp.pad(v.astype(jnp.float32), (0, Cmax - v.shape[0]))
    vec = jnp.stack([_row(params["bn1_s"]), _row(params["bn1_b"]),
                     _row(params["b_se1"]), _row(params["b_se2"]),
                     _row(params["bn2_s"]), _row(params["bn2_b"]),
                     jnp.zeros((Cmax,), jnp.float32),
                     jnp.zeros((Cmax,), jnp.float32)], axis=0)

    # ---- row tiling (bounds per-step VMEM; both grid axes are parallel) -------
    if tile_h is None:
        budget = 4 << 20                   # per-tile f32 intermediate budget
        tile_h = 1
        for th in range(1, Ho + 1):
            if Ho % th == 0 and th * Wo * Cexp_p * 4 <= budget:
                tile_h = th
    assert Ho % tile_h == 0
    R = Ho // tile_h

    cparams = pltpu.CompilerParams(
        dimension_semantics=("parallel", "parallel"),
        vmem_limit_bytes=_VMEM_LIMIT)

    # ---- kernel A: expand conv + BN1 + SiLU + SE pooling partial sums ---------
    y_int, psum = pl.pallas_call(
        partial(_expand_kernel, stride=stride, hq=Hq),
        out_shape=(jax.ShapeDtypeStruct((N, Ho, Wo, Cexp_p), jnp.bfloat16),
                   jax.ShapeDtypeStruct((N, R, 1, Cexp_p), jnp.float32)),
        grid_spec=pltpu.PrefetchScalarGridSpec(
            num_scalar_prefetch=0,
            grid=(N, R),
            in_specs=[
                pl.BlockSpec((1, P * Hq, Wq, Cin_p), lambda n, r: (n, 0, 0, 0)),
                pl.BlockSpec((9 * Cin_p, Cexp_p), lambda n, r: (0, 0)),
                pl.BlockSpec((8, Cmax), lambda n, r: (0, 0)),
            ],
            out_specs=[
                pl.BlockSpec((1, tile_h, Wo, Cexp_p), lambda n, r: (n, r, 0, 0)),
                pl.BlockSpec((1, 1, 1, Cexp_p), lambda n, r: (n, r, 0, 0)),
            ]),
        compiler_params=cparams,
    )(xq, w_exp, vec)

    # ---- kernel B: SE + 1x1 project + BN2 + SiLU + residual -------------------
    in_specs = [
        pl.BlockSpec((1, tile_h, Wo, Cexp_p), lambda n, r: (n, r, 0, 0)),
        pl.BlockSpec((1, R, 1, Cexp_p), lambda n, r: (n, 0, 0, 0)),
        pl.BlockSpec((Cexp_p, Csq_p), lambda n, r: (0, 0)),
        pl.BlockSpec((Csq_p, Cexp_p), lambda n, r: (0, 0)),
        pl.BlockSpec((Cexp_p, Cout_p), lambda n, r: (0, 0)),
        pl.BlockSpec((8, Cmax), lambda n, r: (0, 0)),
    ]
    args = [y_int, psum, w_se1, w_se2, w_proj, vec]
    if shortcut:
        x_res = jnp.pad(x_nhwc, ((0, 0), (0, 0), (0, 0), (0, Cin_p - Cin)))
        in_specs.append(pl.BlockSpec((1, tile_h, Wo, Cin_p),
                                     lambda n, r: (n, r, 0, 0)))
        args.append(x_res)

    out_nhwc = pl.pallas_call(
        partial(_project_kernel, shortcut=shortcut,
                inv_area=1.0 / float(Ho * Wo)),
        out_shape=jax.ShapeDtypeStruct((N, Ho, Wo, Cout_p), x_nchw.dtype),
        grid_spec=pltpu.PrefetchScalarGridSpec(
            num_scalar_prefetch=0,
            grid=(N, R),
            in_specs=in_specs,
            out_specs=pl.BlockSpec((1, tile_h, Wo, Cout_p),
                                   lambda n, r: (n, r, 0, 0))),
        compiler_params=cparams,
    )(*args)

    return jnp.transpose(out_nhwc[..., :Cout], (0, 3, 1, 2))   # back to NCHW


# ---------------------------------------------------------------------------
# Deterministic parameter construction (BatchNorm folded, inference mode).
# ---------------------------------------------------------------------------
def make_params(key, input_c: int, output_c: int):
    Cin, Cexp, Csq, Cout = input_c, input_c * 4, input_c, output_c
    ks = jax.random.split(key, 14)
    eps = 1e-5

    def fold_bn(gamma, beta, mean, var):
        scale = gamma / jnp.sqrt(var + eps)
        return scale, beta - mean * scale

    bn1_s, bn1_b = fold_bn(
        jax.random.uniform(ks[0], (Cexp,), minval=0.5, maxval=1.5),
        jax.random.normal(ks[1], (Cexp,)) * 0.1,
        jax.random.normal(ks[2], (Cexp,)) * 0.1,
        jax.random.uniform(ks[3], (Cexp,), minval=0.5, maxval=1.5))
    bn2_s, bn2_b = fold_bn(
        jax.random.uniform(ks[4], (Cout,), minval=0.5, maxval=1.5),
        jax.random.normal(ks[5], (Cout,)) * 0.1,
        jax.random.normal(ks[6], (Cout,)) * 0.1,
        jax.random.uniform(ks[7], (Cout,), minval=0.5, maxval=1.5))

    return {
        "w_exp":  jax.random.normal(ks[8], (3, 3, Cin, Cexp)) * 0.1,   # HWIO
        "bn1_s":  bn1_s, "bn1_b": bn1_b,
        "w_se1":  jax.random.normal(ks[9], (Cexp, Csq)) * 0.1,
        "b_se1":  jax.random.normal(ks[10], (Csq,)) * 0.1,
        "w_se2":  jax.random.normal(ks[11], (Csq, Cexp)) * 0.1,
        "b_se2":  jax.random.normal(ks[12], (Cexp,)) * 0.1,
        "w_proj": jax.random.normal(ks[13], (Cexp, Cout)) * 0.1,
        "bn2_s":  bn2_s, "bn2_b": bn2_b,
    }


# ---------------------------------------------------------------------------
# Pure-JAX f32 reference (for correctness check).
# ---------------------------------------------------------------------------
def fused_mbconv_ref(x_nchw, p, stride: int):
    x = jnp.transpose(x_nchw, (0, 2, 3, 1))                       # NHWC
    y = lax.conv_general_dilated(
        x, p["w_exp"], (stride, stride), ((1, 1), (1, 1)),
        dimension_numbers=("NHWC", "HWIO", "NHWC"))
    y = y * p["bn1_s"] + p["bn1_b"]
    y = y * jax.nn.sigmoid(y)
    pooled = jnp.mean(y, axis=(1, 2), keepdims=True)
    s = jnp.einsum("nhwc,cd->nhwd", pooled, p["w_se1"]) + p["b_se1"]
    s = s * jax.nn.sigmoid(s)
    s = jnp.einsum("nhwc,cd->nhwd", s, p["w_se2"]) + p["b_se2"]
    s = jax.nn.sigmoid(s)
    y = y * s
    z = jnp.einsum("nhwc,cd->nhwd", y, p["w_proj"])
    z = z * p["bn2_s"] + p["bn2_b"]
    z = z * jax.nn.sigmoid(z)
    if stride == 1:
        z = z + x
    return jnp.transpose(z, (0, 3, 1, 2))


if __name__ == "__main__":
    key = jax.random.PRNGKey(0)
    k_x, k_p1, k_p2 = jax.random.split(key, 3)

    N, Cin, H, W = 2, 4, 16, 16
    x = jax.random.normal(k_x, (N, Cin, H, W), dtype=jnp.float32)

    # bf16 MXU operands (f32 accumulation) -> tolerance looser than pure f32.
    TOL = 5e-2

    # ---- stride = 1 (residual shortcut), 2 row tiles -> exercises cross-tile SE
    params1 = make_params(k_p1, Cin, Cin)
    run1 = jax.jit(lambda a, p: fused_mbconv(a, p, 1, tile_h=8))
    out1 = jax.block_until_ready(run1(x, params1))
    ref1 = jax.block_until_ready(fused_mbconv_ref(x, params1, 1))
    assert out1.shape == ref1.shape
    err1 = float(jnp.max(jnp.abs(out1 - ref1)))
    assert jnp.allclose(out1, ref1, atol=TOL, rtol=TOL), f"stride1 max err {err1}"

    # ---- stride = 2 (no shortcut, phase-split path), Cout = 8 -----------------
    params2 = make_params(k_p2, Cin, 8)
    run2 = jax.jit(lambda a, p: fused_mbconv(a, p, 2, tile_h=4))
    out2 = jax.block_until_ready(run2(x, params2))
    ref2 = jax.block_until_ready(fused_mbconv_ref(x, params2, 2))
    assert out2.shape == ref2.shape
    err2 = float(jnp.max(jnp.abs(out2 - ref2)))
    assert jnp.allclose(out2, ref2, atol=TOL, rtol=TOL), f"stride2 max err {err2}"

    print("KERNEL_OK")
</pallas_src>

<mosaic_0001>
module attributes {stable_mosaic.version = 11 : i64} {
  func.func @_expand_kernel(%arg0: i32, %arg1: i32, %arg2: memref<1x18x18x128xbf16, #tpu.memory_space<vmem>>, %arg3: memref<1152x128xbf16, #tpu.memory_space<vmem>>, %arg4: memref<8x128xf32, #tpu.memory_space<vmem>>, %arg5: memref<1x8x16x128xbf16, #tpu.memory_space<vmem>>, %arg6: memref<1x1x1x128xf32, #tpu.memory_space<vmem>>) attributes {dimension_semantics = [#tpu.dimension_semantics<parallel>, #tpu.dimension_semantics<parallel>], iteration_bounds = array<i64: 2, 2>, scalar_prefetch = 0 : i64, scratch_operands = 0 : i64, tpu.core_type = #tpu.core_type<tc>, window_params = [{transform_indices = @transform_0, window_bounds = array<i64: 1, 18, 18, 128>}, {pipeline_mode = #tpu.pipeline_mode<synchronous>, transform_indices = @transform_1, window_bounds = array<i64: 1152, 128>}, {pipeline_mode = #tpu.pipeline_mode<synchronous>, transform_indices = @transform_2, window_bounds = array<i64: 8, 128>}, {transform_indices = @transform_3, window_bounds = array<i64: 1, 8, 16, 128>}, {transform_indices = @transform_4, window_bounds = array<i64: 1, 1, 1, 128>}]} {
    %c8_i32 = arith.constant 8 : i32
    %0 = arith.muli %arg1, %c8_i32 : i32
    %1 = tpu.assume_multiple %0, 8 : i32
    %c0_i32 = arith.constant 0 : i32
    %2 = arith.addi %c0_i32, %1 : i32
    %c0_i32_0 = arith.constant 0 : i32
    %3 = arith.addi %2, %c0_i32_0 : i32
    %c0 = arith.constant 0 : index
    %4 = arith.index_cast %3 : i32 to index
    %c0_1 = arith.constant 0 : index
    %c0_2 = arith.constant 0 : index
    %5 = vector.load %arg2[%c0, %4, %c0_1, %c0_2] : memref<1x18x18x128xbf16, #tpu.memory_space<vmem>>, vector<1x8x18x128xbf16>
    %6 = vector.shape_cast %5 : vector<1x8x18x128xbf16> to vector<8x18x128xbf16>
    %7 = vector.extract_strided_slice %6 {offsets = [0, 0, 0], sizes = [8, 16, 128], strides = [1, 1, 1]} : vector<8x18x128xbf16> to vector<8x16x128xbf16>
    %8 = vector.extract_strided_slice %6 {offsets = [0, 1, 0], sizes = [8, 16, 128], strides = [1, 1, 1]} : vector<8x18x128xbf16> to vector<8x16x128xbf16>
    %9 = vector.extract_strided_slice %6 {offsets = [0, 2, 0], sizes = [8, 16, 128], strides = [1, 1, 1]} : vector<8x18x128xbf16> to vector<8x16x128xbf16>
    %c0_i32_3 = arith.constant 0 : i32
    %10 = arith.addi %c0_i32_3, %1 : i32
    %c1_i32 = arith.constant 1 : i32
    %11 = arith.addi %10, %c1_i32 : i32
    %c0_4 = arith.constant 0 : index
    %12 = arith.index_cast %11 : i32 to index
    %c0_5 = arith.constant 0 : index
    %c0_6 = arith.constant 0 : index
    %13 = vector.load %arg2[%c0_4, %12, %c0_5, %c0_6] : memref<1x18x18x128xbf16, #tpu.memory_space<vmem>>, vector<1x8x18x128xbf16>
    %14 = vector.shape_cast %13 : vector<1x8x18x128xbf16> to vector<8x18x128xbf16>
    %15 = vector.extract_strided_slice %14 {offsets = [0, 0, 0], sizes = [8, 16, 128], strides = [1, 1, 1]} : vector<8x18x128xbf16> to vector<8x16x128xbf16>
    %16 = vector.extract_strided_slice %14 {offsets = [0, 1, 0], sizes = [8, 16, 128], strides = [1, 1, 1]} : vector<8x18x128xbf16> to vector<8x16x128xbf16>
    %17 = vector.extract_strided_slice %14 {offsets = [0, 2, 0], sizes = [8, 16, 128], strides = [1, 1, 1]} : vector<8x18x128xbf16> to vector<8x16x128xbf16>
    %c0_i32_7 = arith.constant 0 : i32
    %18 = arith.addi %c0_i32_7, %1 : i32
    %c2_i32 = arith.constant 2 : i32
    %19 = arith.addi %18, %c2_i32 : i32
    %c0_8 = arith.constant 0 : index
    %20 = arith.index_cast %19 : i32 to index
    %c0_9 = arith.constant 0 : index
    %c0_10 = arith.constant 0 : index
    %21 = vector.load %arg2[%c0_8, %20, %c0_9, %c0_10] : memref<1x18x18x128xbf16, #tpu.memory_space<vmem>>, vector<1x8x18x128xbf16>
    %22 = vector.shape_cast %21 : vector<1x8x18x128xbf16> to vector<8x18x128xbf16>
    %23 = vector.extract_strided_slice %22 {offsets = [0, 0, 0], sizes = [8, 16, 128], strides = [1, 1, 1]} : vector<8x18x128xbf16> to vector<8x16x128xbf16>
    %24 = vector.extract_strided_slice %22 {offsets = [0, 1, 0], sizes = [8, 16, 128], strides = [1, 1, 1]} : vector<8x18x128xbf16> to vector<8x16x128xbf16>
    %25 = vector.extract_strided_slice %22 {offsets = [0, 2, 0], sizes = [8, 16, 128], strides = [1, 1, 1]} : vector<8x18x128xbf16> to vector<8x16x128xbf16>
    %26 = tpu.concatenate %7, %8, %9, %15, %16, %17, %23, %24, %25 in 2 : vector<8x16x128xbf16>, vector<8x16x128xbf16>, vector<8x16x128xbf16>, vector<8x16x128xbf16>, vector<8x16x128xbf16>, vector<8x16x128xbf16>, vector<8x16x128xbf16>, vector<8x16x128xbf16>, vector<8x16x128xbf16> -> vector<8x16x1152xbf16>
    %27 = vector.shape_cast %26 : vector<8x16x1152xbf16> to vector<128x1152xbf16>
    %c0_11 = arith.constant 0 : index
    %c0_12 = arith.constant 0 : index
    %28 = vector.load %arg3[%c0_11, %c0_12] : memref<1152x128xbf16, #tpu.memory_space<vmem>>, vector<1152x128xbf16>
    %cst = arith.constant dense<0.000000e+00> : vector<128x128xf32>
    %29 = tpu.matmul %27, %28, %cst {dimension_numbers = #tpu.dot_dimension_numbers<[1], [0], [0], [1], [0, 0, 1, 1], [], []>} : vector<128x1152xbf16>, vector<1152x128xbf16>, vector<128x128xf32> -> vector<128x128xf32>
    %c0_13 = arith.constant 0 : index
    %c0_14 = arith.constant 0 : index
    %30 = vector.load %arg4[%c0_13, %c0_14] : memref<8x128xf32, #tpu.memory_space<vmem>>, vector<1x128xf32>
    %c1 = arith.constant 1 : index
    %c0_15 = arith.constant 0 : index
    %31 = vector.load %arg4[%c1, %c0_15] : memref<8x128xf32, #tpu.memory_space<vmem>>, vector<1x128xf32>
    %32 = vector.broadcast %30 : vector<1x128xf32> to vector<128x128xf32>
    %33 = arith.mulf %29, %32 : vector<128x128xf32>
    %34 = vector.broadcast %31 : vector<1x128xf32> to vector<128x128xf32>
    %35 = arith.addf %33, %34 : vector<128x128xf32>
    %cst_16 = arith.constant 0.000000e+00 : f32
    %36 = vector.broadcast %cst_16 : f32 to vector<128x128xf32>
    %37 = arith.subf %36, %35 : vector<128x128xf32>
    %38 = math.exp %37 : vector<128x128xf32>
    %cst_17 = arith.constant 1.000000e+00 : f32
    %39 = vector.broadcast %cst_17 : f32 to vector<128x128xf32>
    %40 = arith.addf %39, %38 : vector<128x128xf32>
    %41 = tpu.reciprocal %40 {approx = true} : vector<128x128xf32> -> vector<128x128xf32>
    %42 = arith.mulf %35, %41 : vector<128x128xf32>
    %cst_18 = arith.constant dense<0.000000e+00> : vector<128xf32>
    %43 = vector.multi_reduction <add>, %42, %cst_18 [0] : vector<128x128xf32> to vector<128xf32>
    %44 = vector.shape_cast %43 : vector<128xf32> to vector<1x128xf32>
    %45 = vector.shape_cast %44 : vector<1x128xf32> to vector<1x1x1x128xf32>
    %c0_19 = arith.constant 0 : index
    %c0_20 = arith.constant 0 : index
    %c0_21 = arith.constant 0 : index
    %c0_22 = arith.constant 0 : index
    %46 = vector.load %arg6[%c0_19, %c0_20, %c0_21, %c0_22] : memref<1x1x1x128xf32, #tpu.memory_space<vmem>>, vector<1x1x1x128xf32>
    tpu.vector_store %arg6[%c0_19, %c0_20, %c0_21, %c0_22], %45 {strides = array<i32>} : memref<1x1x1x128xf32, #tpu.memory_space<vmem>>, vector<1x1x1x128xf32>,
    %47 = vector.shape_cast %42 : vector<128x128xf32> to vector<1x8x16x128xf32>
    %48 = arith.truncf %47 : vector<1x8x16x128xf32> to vector<1x8x16x128xbf16>
    %c0_23 = arith.constant 0 : index
    %c0_24 = arith.constant 0 : index
    %c0_25 = arith.constant 0 : index
    %c0_26 = arith.constant 0 : index
    %49 = vector.load %arg5[%c0_23, %c0_24, %c0_25, %c0_26] : memref<1x8x16x128xbf16, #tpu.memory_space<vmem>>, vector<1x8x16x128xbf16>
    tpu.vector_store %arg5[%c0_23, %c0_24, %c0_25, %c0_26], %48 {strides = array<i32>} : memref<1x8x16x128xbf16, #tpu.memory_space<vmem>>, vector<1x8x16x128xbf16>,
    return
  }
  func.func @transform_0(%arg0: i32, %arg1: i32) -> (i32, i32, i32, i32) {
    %c0_i32 = arith.constant 0 : i32
    %c0_i32_0 = arith.constant 0 : i32
    %c0_i32_1 = arith.constant 0 : i32
    %c0_i32_2 = arith.constant 0 : i32
    return %arg0, %c0_i32, %c0_i32_0, %c0_i32_1 : i32, i32, i32, i32
  }
  func.func @transform_1(%arg0: i32, %arg1: i32) -> (i32, i32) {
    %c0_i32 = arith.constant 0 : i32
    %c0_i32_0 = arith.constant 0 : i32
    %c0_i32_1 = arith.constant 0 : i32
    return %c0_i32, %c0_i32_0 : i32, i32
  }
  func.func @transform_2(%arg0: i32, %arg1: i32) -> (i32, i32) {
    %c0_i32 = arith.constant 0 : i32
    %c0_i32_0 = arith.constant 0 : i32
    %c0_i32_1 = arith.constant 0 : i32
    return %c0_i32, %c0_i32_0 : i32, i32
  }
  func.func @transform_3(%arg0: i32, %arg1: i32) -> (i32, i32, i32, i32) {
    %c0_i32 = arith.constant 0 : i32
    %c0_i32_0 = arith.constant 0 : i32
    %c0_i32_1 = arith.constant 0 : i32
    return %arg0, %arg1, %c0_i32, %c0_i32_0 : i32, i32, i32, i32
  }
  func.func @transform_4(%arg0: i32, %arg1: i32) -> (i32, i32, i32, i32) {
    %c0_i32 = arith.constant 0 : i32
    %c0_i32_0 = arith.constant 0 : i32
    %c0_i32_1 = arith.constant 0 : i32
    return %arg0, %arg1, %c0_i32, %c0_i32_0 : i32, i32, i32, i32
  }
}

module attributes {stable_mosaic.version = 11 : i64} {
  func.func @_project_kernel(%arg0: i32, %arg1: i32, %arg2: memref<1x8x16x128xbf16, #tpu.memory_space<vmem>>, %arg3: memref<1x2x1x128xf32, #tpu.memory_space<vmem>>, %arg4: memref<128x128xf32, #tpu.memory_space<vmem>>, %arg5: memref<128x128xf32, #tpu.memory_space<vmem>>, %arg6: memref<128x128xbf16, #tpu.memory_space<vmem>>, %arg7: memref<8x128xf32, #tpu.memory_space<vmem>>, %arg8: memref<1x8x16x128xf32, #tpu.memory_space<vmem>>, %arg9: memref<1x8x16x128xf32, #tpu.memory_space<vmem>>) attributes {dimension_semantics = [#tpu.dimension_semantics<parallel>, #tpu.dimension_semantics<parallel>], iteration_bounds = array<i64: 2, 2>, scalar_prefetch = 0 : i64, scratch_operands = 0 : i64, tpu.core_type = #tpu.core_type<tc>, window_params = [{transform_indices = @transform_0, window_bounds = array<i64: 1, 8, 16, 128>}, {transform_indices = @transform_1, window_bounds = array<i64: 1, 2, 1, 128>}, {pipeline_mode = #tpu.pipeline_mode<synchronous>, transform_indices = @transform_2, window_bounds = array<i64: 128, 128>}, {pipeline_mode = #tpu.pipeline_mode<synchronous>, transform_indices = @transform_3, window_bounds = array<i64: 128, 128>}, {pipeline_mode = #tpu.pipeline_mode<synchronous>, transform_indices = @transform_4, window_bounds = array<i64: 128, 128>}, {pipeline_mode = #tpu.pipeline_mode<synchronous>, transform_indices = @transform_5, window_bounds = array<i64: 8, 128>}, {transform_indices = @transform_6, window_bounds = array<i64: 1, 8, 16, 128>}, {transform_indices = @transform_7, window_bounds = array<i64: 1, 8, 16, 128>}]} {
    %c0 = arith.constant 0 : index
    %c0_0 = arith.constant 0 : index
    %c0_1 = arith.constant 0 : index
    %c0_2 = arith.constant 0 : index
    %0 = vector.load %arg3[%c0, %c0_0, %c0_1, %c0_2] : memref<1x2x1x128xf32, #tpu.memory_space<vmem>>, vector<1x2x1x128xf32>
    %1 = vector.shape_cast %0 : vector<1x2x1x128xf32> to vector<2x1x128xf32>
    %cst = arith.constant dense<0.000000e+00> : vector<1x128xf32>
    %2 = vector.multi_reduction <add>, %1, %cst [0] : vector<2x1x128xf32> to vector<1x128xf32>
    %cst_3 = arith.constant 3.906250e-03 : f32
    %3 = vector.broadcast %cst_3 : f32 to vector<1x128xf32>
    %4 = arith.mulf %2, %3 : vector<1x128xf32>
    %c2 = arith.constant 2 : index
    %c0_4 = arith.constant 0 : index
    %5 = vector.load %arg7[%c2, %c0_4] : memref<8x128xf32, #tpu.memory_space<vmem>>, vector<1x128xf32>
    %c3 = arith.constant 3 : index
    %c0_5 = arith.constant 0 : index
    %6 = vector.load %arg7[%c3, %c0_5] : memref<8x128xf32, #tpu.memory_space<vmem>>, vector<1x128xf32>
    %c4 = arith.constant 4 : index
    %c0_6 = arith.constant 0 : index
    %7 = vector.load %arg7[%c4, %c0_6] : memref<8x128xf32, #tpu.memory_space<vmem>>, vector<1x128xf32>
    %c5 = arith.constant 5 : index
    %c0_7 = arith.constant 0 : index
    %8 = vector.load %arg7[%c5, %c0_7] : memref<8x128xf32, #tpu.memory_space<vmem>>, vector<1x128xf32>
    %c0_8 = arith.constant 0 : index
    %c0_9 = arith.constant 0 : index
    %9 = vector.load %arg4[%c0_8, %c0_9] : memref<128x128xf32, #tpu.memory_space<vmem>>, vector<128x128xf32>
    %cst_10 = arith.constant dense<0.000000e+00> : vector<1x128xf32>
    %10 = tpu.matmul %4, %9, %cst_10 {dimension_numbers = #tpu.dot_dimension_numbers<[1], [0], [0], [1], [0, 0, 1, 1], [], []>} : vector<1x128xf32>, vector<128x128xf32>, vector<1x128xf32> -> vector<1x128xf32>
    %11 = arith.addf %10, %5 : vector<1x128xf32>
    %cst_11 = arith.constant 0.000000e+00 : f32
    %12 = vector.broadcast %cst_11 : f32 to vector<1x128xf32>
    %13 = arith.subf %12, %11 : vector<1x128xf32>
    %14 = math.exp %13 : vector<1x128xf32>
    %cst_12 = arith.constant 1.000000e+00 : f32
    %15 = vector.broadcast %cst_12 : f32 to vector<1x128xf32>
    %16 = arith.addf %15, %14 : vector<1x128xf32>
    %17 = tpu.reciprocal %16 {approx = true} : vector<1x128xf32> -> vector<1x128xf32>
    %18 = arith.mulf %11, %17 : vector<1x128xf32>
    %c0_13 = arith.constant 0 : index
    %c0_14 = arith.constant 0 : index
    %19 = vector.load %arg5[%c0_13, %c0_14] : memref<128x128xf32, #tpu.memory_space<vmem>>, vector<128x128xf32>
    %cst_15 = arith.constant dense<0.000000e+00> : vector<1x128xf32>
    %20 = tpu.matmul %18, %19, %cst_15 {dimension_numbers = #tpu.dot_dimension_numbers<[1], [0], [0], [1], [0, 0, 1, 1], [], []>} : vector<1x128xf32>, vector<128x128xf32>, vector<1x128xf32> -> vector<1x128xf32>
    %21 = arith.addf %20, %6 : vector<1x128xf32>
    %cst_16 = arith.constant 0.000000e+00 : f32
    %22 = vector.broadcast %cst_16 : f32 to vector<1x128xf32>
    %23 = arith.subf %22, %21 : vector<1x128xf32>
    %24 = math.exp %23 : vector<1x128xf32>
    %cst_17 = arith.constant 1.000000e+00 : f32
    %25 = vector.broadcast %cst_17 : f32 to vector<1x128xf32>
    %26 = arith.addf %25, %24 : vector<1x128xf32>
    %27 = tpu.reciprocal %26 {approx = true} : vector<1x128xf32> -> vector<1x128xf32>
    %c0_18 = arith.constant 0 : index
    %c0_19 = arith.constant 0 : index
    %c0_20 = arith.constant 0 : index
    %c0_21 = arith.constant 0 : index
    %28 = vector.load %arg2[%c0_18, %c0_19, %c0_20, %c0_21] : memref<1x8x16x128xbf16, #tpu.memory_space<vmem>>, vector<1x8x16x128xbf16>
    %29 = vector.shape_cast %28 : vector<1x8x16x128xbf16> to vector<8x16x128xbf16>
    %30 = vector.shape_cast %29 : vector<8x16x128xbf16> to vector<128x128xbf16>
    %31 = arith.extf %30 : vector<128x128xbf16> to vector<128x128xf32>
    %32 = vector.broadcast %27 : vector<1x128xf32> to vector<128x128xf32>
    %33 = arith.mulf %31, %32 : vector<128x128xf32>
    %34 = arith.truncf %33 : vector<128x128xf32> to vector<128x128xbf16>
    %c0_22 = arith.constant 0 : index
    %c0_23 = arith.constant 0 : index
    %35 = vector.load %arg6[%c0_22, %c0_23] : memref<128x128xbf16, #tpu.memory_space<vmem>>, vector<128x128xbf16>
    %cst_24 = arith.constant dense<0.000000e+00> : vector<128x128xf32>
    %36 = tpu.matmul %34, %35, %cst_24 {dimension_numbers = #tpu.dot_dimension_numbers<[1], [0], [0], [1], [0, 0, 1, 1], [], []>} : vector<128x128xbf16>, vector<128x128xbf16>, vector<128x128xf32> -> vector<128x128xf32>
    %37 = vector.broadcast %7 : vector<1x128xf32> to vector<128x128xf32>
    %38 = arith.mulf %36, %37 : vector<128x128xf32>
    %39 = vector.broadcast %8 : vector<1x128xf32> to vector<128x128xf32>
    %40 = arith.addf %38, %39 : vector<128x128xf32>
    %cst_25 = arith.constant 0.000000e+00 : f32
    %41 = vector.broadcast %cst_25 : f32 to vector<128x128xf32>
    %42 = arith.subf %41, %40 : vector<128x128xf32>
    %43 = math.exp %42 : vector<128x128xf32>
    %cst_26 = arith.constant 1.000000e+00 : f32
    %44 = vector.broadcast %cst_26 : f32 to vector<128x128xf32>
    %45 = arith.addf %44, %43 : vector<128x128xf32>
    %46 = tpu.reciprocal %45 {approx = true} : vector<128x128xf32> -> vector<128x128xf32>
    %47 = arith.mulf %40, %46 : vector<128x128xf32>
    %c0_27 = arith.constant 0 : index
    %c0_28 = arith.constant 0 : index
    %c0_29 = arith.constant 0 : index
    %c0_30 = arith.constant 0 : index
    %48 = vector.load %arg8[%c0_27, %c0_28, %c0_29, %c0_30] : memref<1x8x16x128xf32, #tpu.memory_space<vmem>>, vector<1x8x16x128xf32>
    %49 = vector.shape_cast %48 : vector<1x8x16x128xf32> to vector<8x16x128xf32>
    %50 = vector.shape_cast %49 : vector<8x16x128xf32> to vector<128x128xf32>
    %51 = arith.addf %47, %50 : vector<128x128xf32>
    %52 = vector.shape_cast %51 : vector<128x128xf32> to vector<1x8x16x128xf32>
    %c0_31 = arith.constant 0 : index
    %c0_32 = arith.constant 0 : index
    %c0_33 = arith.constant 0 : index
    %c0_34 = arith.constant 0 : index
    %53 = vector.load %arg9[%c0_31, %c0_32, %c0_33, %c0_34] : memref<1x8x16x128xf32, #tpu.memory_space<vmem>>, vector<1x8x16x128xf32>
    tpu.vector_store %arg9[%c0_31, %c0_32, %c0_33, %c0_34], %52 {strides = array<i32>} : memref<1x8x16x128xf32, #tpu.memory_space<vmem>>, vector<1x8x16x128xf32>,
    return
  }
  func.func @transform_0(%arg0: i32, %arg1: i32) -> (i32, i32, i32, i32) {
    %c0_i32 = arith.constant 0 : i32
    %c0_i32_0 = arith.constant 0 : i32
    %c0_i32_1 = arith.constant 0 : i32
    return %arg0, %arg1, %c0_i32, %c0_i32_0 : i32, i32, i32, i32
  }
  func.func @transform_1(%arg0: i32, %arg1: i32) -> (i32, i32, i32, i32) {
    %c0_i32 = arith.constant 0 : i32
    %c0_i32_0 = arith.constant 0 : i32
    %c0_i32_1 = arith.constant 0 : i32
    %c0_i32_2 = arith.constant 0 : i32
    return %arg0, %c0_i32, %c0_i32_0, %c0_i32_1 : i32, i32, i32, i32
  }
  func.func @transform_2(%arg0: i32, %arg1: i32) -> (i32, i32) {
    %c0_i32 = arith.constant 0 : i32
    %c0_i32_0 = arith.constant 0 : i32
    %c0_i32_1 = arith.constant 0 : i32
    return %c0_i32, %c0_i32_0 : i32, i32
  }
  func.func @transform_3(%arg0: i32, %arg1: i32) -> (i32, i32) {
    %c0_i32 = arith.constant 0 : i32
    %c0_i32_0 = arith.constant 0 : i32
    %c0_i32_1 = arith.constant 0 : i32
    return %c0_i32, %c0_i32_0 : i32, i32
  }
  func.func @transform_4(%arg0: i32, %arg1: i32) -> (i32, i32) {
    %c0_i32 = arith.constant 0 : i32
    %c0_i32_0 = arith.constant 0 : i32
    %c0_i32_1 = arith.constant 0 : i32
    return %c0_i32, %c0_i32_0 : i32, i32
  }
  func.func @transform_5(%arg0: i32, %arg1: i32) -> (i32, i32) {
    %c0_i32 = arith.constant 0 : i32
    %c0_i32_0 = arith.constant 0 : i32
    %c0_i32_1 = arith.constant 0 : i32
    return %c0_i32, %c0_i32_0 : i32, i32
  }
  func.func @transform_6(%arg0: i32, %arg1: i32) -> (i32, i32, i32, i32) {
    %c0_i32 = arith.constant 0 : i32
    %c0_i32_0 = arith.constant 0 : i32
    %c0_i32_1 = arith.constant 0 : i32
    return %arg0, %arg1, %c0_i32, %c0_i32_0 : i32, i32, i32, i32
  }
  func.func @transform_7(%arg0: i32, %arg1: i32) -> (i32, i32, i32, i32) {
    %c0_i32 = arith.constant 0 : i32
    %c0_i32_0 = arith.constant 0 : i32
    %c0_i32_1 = arith.constant 0 : i32
    return %arg0, %arg1, %c0_i32, %c0_i32_0 : i32, i32, i32, i32
  }
}

</mosaic_0001>

<llo_original>
// kernel: _lambda_.3
$region0: #{_lambda_.3}
  #allocation0 [shape = 'u32[]', space=smem, size = 0x4, offset = 0x4, fixed_abs, tag = 'smem constant byte address 0x4 - core index']
  #allocation1 [shape = 'u32[72,128]{1,0:T(1,128)}', space=vmem, size = 0x9000, scoped, tag = 'internal scratch']
  %s0 = inlined_call_operand.vmem [shape: bf16[2,16,16,128], index: 0, kind: input, shape index: {}]
  %s1 = inlined_call_operand.vmem [shape: f32[2,2,1,128], index: 1, kind: input, shape index: {}]
  %s2 = inlined_call_operand.vmem [shape: f32[128,128], index: 2, kind: input, shape index: {}]
  %s3 = inlined_call_operand.vmem [shape: f32[128,128], index: 3, kind: input, shape index: {}]
  %s4 = inlined_call_operand.vmem [shape: bf16[128,128], index: 4, kind: input, shape index: {}]
  %s5 = inlined_call_operand.vmem [shape: f32[8,128], index: 5, kind: input, shape index: {}]
  %s6 = inlined_call_operand.vmem [shape: f32[2,16,16,128], index: 6, kind: input, shape index: {}]
  %s7 = inlined_call_operand.vmem [shape: f32[2,16,16,128], index: 7, kind: output, shape index: {}]
  %s8 = sld [smem:[#allocation0]]
  $region61: #{_lambda_.3} parent=0
    _
  %s10 = ssub.s32 1, %s8
  %s11 = scalar_select 0, %s10, %s8
  loop: start=0, step=1, limit=6
  $region2: #{_lambda_.3} parent=0 // loop_pre_header
    _
  $region3: #{_lambda_.3} parent=0 // loop_header
    %s13 = sphi 0, %s17
    %p14 = scmp.ge.s32.totalorder %s13, 6
    %s20 = sphi 0, %s32
    %s21 = sphi 0, %s28
    %s22 = sphi 0, %s20
    %s23 = sphi 0, %s21
    %s24 = sphi 0, %s22
    %s25 = sphi 0, %s23
    %s37 = sphi 0, %s39
    %s40 = sphi 0, %s37
    %s41 = sphi 0, %s40
    %s57 = sphi 0, %s41
    %s63 = sphi 0, %s65
    %s66 = sphi 0, %s63
    %s67 = sphi 0, %s66
    %s83 = sphi 0, %s67
    %s87 = sphi 0, %s87
    %s89 = sphi 0, %s87
    %s90 = sphi 0, %s89
    %s104 = sphi 0, %s90
    %s108 = sphi 0, %s108
    %s110 = sphi 0, %s108
    %s111 = sphi 0, %s110
    %s125 = sphi 0, %s111
    %s129 = sphi 0, %s129
    %s131 = sphi 0, %s129
    %s132 = sphi 0, %s131
    %s146 = sphi 0, %s132
    %s150 = sphi 0, %s150
    %s152 = sphi 0, %s150
    %s153 = sphi 0, %s152
    %s167 = sphi 0, %s153
    %s175 = sphi 0, %s177
    %s178 = sphi 0, %s175
    %s179 = sphi 0, %s178
    %s195 = sphi 0, %s179
    %s203 = sphi 0, %s205
    %s206 = sphi 0, %s203
    %s207 = sphi 0, %s206
    %s223 = sphi 0, %s207
  $region4: #{_lambda_.3} parent=0 // loop_header_branch
    %16 = sbr.rel (%p14) target = $region8
  $region5: #{_lambda_.3} parent=0 // loop_body
    %s18 = ssub.s32 %s13, 1
    %s19 = ssub.s32 %s13, 2
    %s26 = sadd.s32 1, %s21
    %p27 = scmp.ge.s32.totalorder %s26, 2
    %s28 = scalar_select %p27, 0, %s26
    %s29 = sadd.s32 1, %s20
    %s30 = scalar_select %p27, %s29, %s20
    %p31 = scmp.ge.s32.totalorder %s30, 2
    %s32 = scalar_select %p31, 0, %s30
    %s33 = ssub.s32 %s20, %s32
    %s34 = ssub.s32 %s21, %s28
    %s35 = sor.u32 %s33, %s34
    %p36 = scmp.eq.s32.totalorder %s35, 0
    %s38 = sadd.s32 %s37, 1
    %s39 = scalar_select %p36, %s37, %s38
    %p42 = pneg %p36
    %p43 = scmp.eq.s32.totalorder %s13, 3
    %p44 = por %p42, %p43
    %p45 = scmp.ne.s32.totalorder %s37, %s40
    %p46 = scmp.eq.s32.totalorder %s13, 0
    %p47 = por %p45, %p46
    %p48 = scmp.ne.s32.totalorder %s37, %s40
    %p49 = scmp.eq.s32.totalorder %s18, 3
    %p50 = por %p48, %p49
    %p51 = scmp.ne.s32.totalorder %s40, %s41
    %p52 = scmp.eq.s32.totalorder %s18, 0
    %p53 = por %p51, %p52
    %p54 = scmp.ne.s32.totalorder %s40, %s41
    %p55 = scmp.eq.s32.totalorder %s19, 3
    %p56 = por %p54, %p55
    %p58 = scmp.ne.s32.totalorder %s41, %s57
    %p59 = scmp.eq.s32.totalorder %s19, 0
    %p60 = por %p58, %p59
    %s61 = ssub.s32 %s20, %s32
    %p62 = scmp.eq.s32.totalorder %s61, 0
    %s64 = sadd.s32 %s63, 1
    %s65 = scalar_select %p62, %s63, %s64
    %p68 = pneg %p62
    %p69 = scmp.eq.s32.totalorder %s13, 3
    %p70 = por %p68, %p69
    %p71 = scmp.ne.s32.totalorder %s63, %s66
    %p72 = scmp.eq.s32.totalorder %s13, 0
    %p73 = por %p71, %p72
    %p74 = scmp.ne.s32.totalorder %s63, %s66
    %p75 = scmp.eq.s32.totalorder %s18, 3
    %p76 = por %p74, %p75
    %p77 = scmp.ne.s32.totalorder %s66, %s67
    %p78 = scmp.eq.s32.totalorder %s18, 0
    %p79 = por %p77, %p78
    %p80 = scmp.ne.s32.totalorder %s66, %s67
    %p81 = scmp.eq.s32.totalorder %s19, 3
    %p82 = por %p80, %p81
    %p84 = scmp.ne.s32.totalorder %s67, %s83
    %p85 = scmp.eq.s32.totalorder %s19, 0
    %p86 = por %p84, %p85
    %s88 = sadd.s32 %s87, 1
    %p91 = scmp.eq.s32.totalorder %s13, 3
    %p92 = scmp.ne.s32.totalorder %s87, %s89
    %p93 = scmp.eq.s32.totalorder %s13, 0
    %p94 = por %p92, %p93
    %p95 = scmp.ne.s32.totalorder %s87, %s89
    %p96 = scmp.eq.s32.totalorder %s18, 3
    %p97 = por %p95, %p96
    %p98 = scmp.ne.s32.totalorder %s89, %s90
    %p99 = scmp.eq.s32.totalorder %s18, 0
    %p100 = por %p98, %p99
    %p101 = scmp.ne.s32.totalorder %s89, %s90
    %p102 = scmp.eq.s32.totalorder %s19, 3
    %p103 = por %p101, %p102
    %p105 = scmp.ne.s32.totalorder %s90, %s104
    %p106 = scmp.eq.s32.totalorder %s19, 0
    %p107 = por %p105, %p106
    %s109 = sadd.s32 %s108, 1
    %p112 = scmp.eq.s32.totalorder %s13, 3
    %p113 = scmp.ne.s32.totalorder %s108, %s110
    %p114 = scmp.eq.s32.totalorder %s13, 0
    %p115 = por %p113, %p114
    %p116 = scmp.ne.s32.totalorder %s108, %s110
    %p117 = scmp.eq.s32.totalorder %s18, 3
    %p118 = por %p116, %p117
    %p119 = scmp.ne.s32.totalorder %s110, %s111
    %p120 = scmp.eq.s32.totalorder %s18, 0
    %p121 = por %p119, %p120
    %p122 = scmp.ne.s32.totalorder %s110, %s111
    %p123 = scmp.eq.s32.totalorder %s19, 3
    %p124 = por %p122, %p123
    %p126 = scmp.ne.s32.totalorder %s111, %s125
    %p127 = scmp.eq.s32.totalorder %s19, 0
    %p128 = por %p126, %p127
    %s130 = sadd.s32 %s129, 1
    %p133 = scmp.eq.s32.totalorder %s13, 3
    %p134 = scmp.ne.s32.totalorder %s129, %s131
    %p135 = scmp.eq.s32.totalorder %s13, 0
    %p136 = por %p134, %p135
    %p137 = scmp.ne.s32.totalorder %s129, %s131
    %p138 = scmp.eq.s32.totalorder %s18, 3
    %p139 = por %p137, %p138
    %p140 = scmp.ne.s32.totalorder %s131, %s132
    %p141 = scmp.eq.s32.totalorder %s18, 0
    %p142 = por %p140, %p141
    %p143 = scmp.ne.s32.totalorder %s131, %s132
    %p144 = scmp.eq.s32.totalorder %s19, 3
    %p145 = por %p143, %p144
    %p147 = scmp.ne.s32.totalorder %s132, %s146
    %p148 = scmp.eq.s32.totalorder %s19, 0
    %p149 = por %p147, %p148
    %s151 = sadd.s32 %s150, 1
    %p154 = scmp.eq.s32.totalorder %s13, 3
    %p155 = scmp.ne.s32.totalorder %s150, %s152
    %p156 = scmp.eq.s32.totalorder %s13, 0
    %p157 = por %p155, %p156
    %p158 = scmp.ne.s32.totalorder %s150, %s152
    %p159 = scmp.eq.s32.totalorder %s18, 3
    %p160 = por %p158, %p159
    %p161 = scmp.ne.s32.totalorder %s152, %s153
    %p162 = scmp.eq.s32.totalorder %s18, 0
    %p163 = por %p161, %p162
    %p164 = scmp.ne.s32.totalorder %s152, %s153
    %p165 = scmp.eq.s32.totalorder %s19, 3
    %p166 = por %p164, %p165
    %p168 = scmp.ne.s32.totalorder %s153, %s167
    %p169 = scmp.eq.s32.totalorder %s19, 0
    %p170 = por %p168, %p169
    %s171 = ssub.s32 %s20, %s32
    %s172 = ssub.s32 %s21, %s28
    %s173 = sor.u32 %s171, %s172
    %p174 = scmp.eq.s32.totalorder %s173, 0
    %s176 = sadd.s32 %s175, 1
    %s177 = scalar_select %p174, %s175, %s176
    %p180 = pneg %p174
    %p181 = scmp.eq.s32.totalorder %s13, 3
    %p182 = por %p180, %p181
    %p183 = scmp.ne.s32.totalorder %s175, %s178
    %p184 = scmp.eq.s32.totalorder %s13, 0
    %p185 = por %p183, %p184
    %p186 = scmp.ne.s32.totalorder %s175, %s178
    %p187 = scmp.eq.s32.totalorder %s18, 3
    %p188 = por %p186, %p187
    %p189 = scmp.ne.s32.totalorder %s178, %s179
    %p190 = scmp.eq.s32.totalorder %s18, 0
    %p191 = por %p189, %p190
    %p192 = scmp.ne.s32.totalorder %s178, %s179
    %p193 = scmp.eq.s32.totalorder %s19, 3
    %p194 = por %p192, %p193
    %p196 = scmp.ne.s32.totalorder %s179, %s195
    %p197 = scmp.eq.s32.totalorder %s19, 0
    %p198 = por %p196, %p197
    %s199 = ssub.s32 %s20, %s32
    %s200 = ssub.s32 %s21, %s28
    %s201 = sor.u32 %s199, %s200
    %p202 = scmp.eq.s32.totalorder %s201, 0
    %s204 = sadd.s32 %s203, 1
    %s205 = scalar_select %p202, %s203, %s204
    %p208 = pneg %p202
    %p209 = scmp.eq.s32.totalorder %s13, 3
    %p210 = por %p208, %p209
    %p211 = scmp.ne.s32.totalorder %s203, %s206
    %p212 = scmp.eq.s32.totalorder %s13, 0
    %p213 = por %p211, %p212
    %p214 = scmp.ne.s32.totalorder %s203, %s206
    %p215 = scmp.eq.s32.totalorder %s18, 3
    %p216 = por %p214, %p215
    %p217 = scmp.ne.s32.totalorder %s206, %s207
    %p218 = scmp.eq.s32.totalorder %s18, 0
    %p219 = por %p217, %p218
    %p220 = scmp.ne.s32.totalorder %s206, %s207
    %p221 = scmp.eq.s32.totalorder %s19, 3
    %p222 = por %p220, %p221
    %p224 = scmp.ne.s32.totalorder %s207, %s223
    %p225 = scmp.eq.s32.totalorder %s19, 0
    %p226 = por %p224, %p225
    %p227 = scmp.le.s32.totalorder 1, %s13
    %p228 = scmp.lt.s32.totalorder %s13, 5
    %p229 = pnand %p227, %p228
    %p230 = pneg %p229
    // Predicated region
    $region9: #{_lambda_.3} parent=5 // pred_check
      _
    $region10: #{_lambda_.3} parent=5 // pred_check_branch
      %232 = sbr.rel (%p229) target = $region12
    $region11: #{_lambda_.3} parent=5 // pred_region
      %s233 = ssub.s32 %s13, 1
      // Predicated region
      $region13: #{_lambda_.3} parent=11 // pred_check
        %p234 = pneg %p100
      $region14: #{_lambda_.3} parent=11 // pred_check_branch
        %236 = sbr.rel (%p234) target = $region16
      $region15: #{_lambda_.3} parent=11 // pred_region
        _
      $region16: #{_lambda_.3} parent=11 // pred_fallthru
        _
      // Predicated region
      $region17: #{_lambda_.3} parent=11 // pred_check
        %p237 = pneg %p121
      $region18: #{_lambda_.3} parent=11 // pred_check_branch
        %239 = sbr.rel (%p237) target = $region20
      $region19: #{_lambda_.3} parent=11 // pred_region
        _
      $region20: #{_lambda_.3} parent=11 // pred_fallthru
        _
      // Predicated region
      $region21: #{_lambda_.3} parent=11 // pred_check
        %p240 = pneg %p142
      $region22: #{_lambda_.3} parent=11 // pred_check_branch
        %242 = sbr.rel (%p240) target = $region24
      $region23: #{_lambda_.3} parent=11 // pred_region
        _
      $region24: #{_lambda_.3} parent=11 // pred_fallthru
        _
      // Predicated region
      $region25: #{_lambda_.3} parent=11 // pred_check
        %p243 = pneg %p163
      $region26: #{_lambda_.3} parent=11 // pred_check_branch
        %245 = sbr.rel (%p243) target = $region28
      $region27: #{_lambda_.3} parent=11 // pred_region
        _
      $region28: #{_lambda_.3} parent=11 // pred_fallthru
        _
    $region12: #{_lambda_.3} parent=5 // pred_fallthru
      _
    %p246 = scmp.lt.s32.totalorder %s13, 4
    // Predicated region
    $region29: #{_lambda_.3} parent=5 // pred_check
      %p247 = pneg %p246
    $region30: #{_lambda_.3} parent=5 // pred_check_branch
      %249 = sbr.rel (%p247) target = $region32
    $region31: #{_lambda_.3} parent=5 // pred_region
      // Predicated region
      $region33: #{_lambda_.3} parent=31 // pred_check
        %p250 = pneg %p47
      $region34: #{_lambda_.3} parent=31 // pred_check_branch
        %252 = sbr.rel (%p250) target = $region36
      $region35: #{_lambda_.3} parent=31 // pred_region
        %s253 = smul.u32 8, %s21
        %p254 = scmp.lt.s32.totalorder %s20, 1
        %s255 = scalar_select %p254, %s20, 1
        %p256 = scmp.lt.s32.totalorder %s253, 15
        %s257 = scalar_select %p256, %s253, 15
        %s258 = smul.addr %s257, 2
        %s259 = smul.addr %s255, 32
        %s260 = sadd.s32 %s258, %s259
        %s261 = smul.addr %s260, 4
        %s262 = scalar_lea.vmem %s0, %s261
        %s263 = smul.u32 8, %s21
      $region36: #{_lambda_.3} parent=31 // pred_fallthru
        _
      // Predicated region
      $region37: #{_lambda_.3} parent=31 // pred_check
        %p264 = pneg %p73
      $region38: #{_lambda_.3} parent=31 // pred_check_branch
        %266 = sbr.rel (%p264) target = $region40
      $region39: #{_lambda_.3} parent=31 // pred_region
        %p267 = scmp.lt.s32.totalorder %s20, 1
        %s268 = scalar_select %p267, %s20, 1
        %s269 = smul.addr %s268, 2
        %s270 = scalar_lea.vmem %s1, %s269
      $region40: #{_lambda_.3} parent=31 // pred_fallthru
        _
      // Predicated region
      $region41: #{_lambda_.3} parent=31 // pred_check
        %p271 = pneg %p185
      $region42: #{_lambda_.3} parent=31 // pred_check_branch
        %273 = sbr.rel (%p271) target = $region44
      $region43: #{_lambda_.3} parent=31 // pred_region
        %s274 = smul.u32 8, %s21
        %p275 = scmp.lt.s32.totalorder %s20, 1
        %s276 = scalar_select %p275, %s20, 1
        %p277 = scmp.lt.s32.totalorder %s274, 15
        %s278 = scalar_select %p277, %s274, 15
        %s279 = smul.addr %s278, 2
        %s280 = smul.addr %s276, 32
        %s281 = sadd.s32 %s279, %s280
        %s282 = smul.addr %s281, 8
        %s283 = scalar_lea.vmem %s6, %s282
        %s284 = smul.u32 8, %s21
      $region44: #{_lambda_.3} parent=31 // pred_fallthru
        _
    $region32: #{_lambda_.3} parent=5 // pred_fallthru
      _
    %p285 = scmp.le.s32.totalorder 1, %s13
    %p286 = scmp.lt.s32.totalorder %s13, 5
    %p287 = pnand %p285, %p286
    %p288 = pneg %p287
    // Predicated region
    $region45: #{_lambda_.3} parent=5 // pred_check
      _
    $region46: #{_lambda_.3} parent=5 // pred_check_branch
      %290 = sbr.rel (%p287) target = $region48
    $region47: #{_lambda_.3} parent=5 // pred_region
      %s291 = ssub.s32 %s13, 1
      %s292 = smul.u32 8, %s23
      %p293 = scmp.lt.s32.totalorder %s22, 1
      %s294 = scalar_select %p293, %s22, 1
      %p295 = scmp.lt.s32.totalorder %s292, 15
      %s296 = scalar_select %p295, %s292, 15
      %s297 = smul.addr %s296, 2
      %s298 = smul.addr %s294, 32
      %s299 = sadd.s32 %s297, %s298
      %s300 = smul.addr %s299, 4
      %s301 = scalar_lea.vmem %s0, %s300
      %p302 = pneg %p53
      %p303 = pneg %p50
      %p304 = scmp.lt.s32.totalorder %s22, 1
      %s305 = scalar_select %p304, %s22, 1
      %s306 = smul.addr %s305, 2
      %s307 = scalar_lea.vmem %s1, %s306
      %p308 = pneg %p79
      %p309 = pneg %p76
      %p310 = pneg %p100
      %p311 = pneg %p97
      %p312 = pneg %p121
      %p313 = pneg %p118
      %p314 = pneg %p142
      %p315 = pneg %p139
      %p316 = pneg %p163
      %p317 = pneg %p160
      %s318 = smul.u32 8, %s23
      %p319 = scmp.lt.s32.totalorder %s22, 1
      %s320 = scalar_select %p319, %s22, 1
      %p321 = scmp.lt.s32.totalorder %s318, 15
      %s322 = scalar_select %p321, %s318, 15
      %s323 = smul.addr %s322, 2
      %s324 = smul.addr %s320, 32
      %s325 = sadd.s32 %s323, %s324
      %s326 = smul.addr %s325, 8
      %s327 = scalar_lea.vmem %s6, %s326
      %p328 = pneg %p191
      %p329 = pneg %p188
      %p330 = pneg %p219
      %p331 = pneg %p216
      %s332 = smul.u32 8, %s23
      %p333 = scmp.lt.s32.totalorder %s22, 1
      %s334 = scalar_select %p333, %s22, 1
      %p335 = scmp.lt.s32.totalorder %s332, 15
      %s336 = scalar_select %p335, %s332, 15
      %s337 = smul.addr %s336, 2
      %s338 = smul.addr %s334, 32
      %s339 = sadd.s32 %s337, %s338
      %s340 = smul.addr %s339, 8
      %s341 = scalar_lea.vmem %s7, %s340
      %s342 = smul.u32 8, %s23
      %p343 = scmp.lt.s32.totalorder %s22, 1
      %s344 = scalar_select %p343, %s22, 1
      %p345 = scmp.lt.s32.totalorder %s342, 15
      %s346 = scalar_select %p345, %s342, 15
      %s347 = smul.addr %s346, 2
      %s348 = smul.addr %s344, 32
      %s349 = sadd.s32 %s347, %s348
      %s350 = smul.addr %s349, 4
      %s351 = scalar_lea.vmem %s0, %s350
      %s352 = smul.u32 8, %s23
      %p353 = scmp.lt.s32.totalorder %s22, 1
      %s354 = scalar_select %p353, %s22, 1
      %s355 = smul.addr %s354, 2
      %s356 = scalar_lea.vmem %s1, %s355
      %s357 = smul.u32 8, %s23
      %p358 = scmp.lt.s32.totalorder %s22, 1
      %s359 = scalar_select %p358, %s22, 1
      %p360 = scmp.lt.s32.totalorder %s357, 15
      %s361 = scalar_select %p360, %s357, 15
      %s362 = smul.addr %s361, 2
      %s363 = smul.addr %s359, 32
      %s364 = sadd.s32 %s362, %s363
      %s365 = smul.addr %s364, 8
      %s366 = scalar_lea.vmem %s6, %s365
      %s367 = smul.u32 8, %s23
      %s368 = smul.u32 8, %s23
      %p369 = scmp.lt.s32.totalorder %s22, 1
      %s370 = scalar_select %p369, %s22, 1
      %p371 = scmp.lt.s32.totalorder %s368, 15
      %s372 = scalar_select %p371, %s368, 15
      %s373 = smul.addr %s372, 2
      %s374 = smul.addr %s370, 32
      %s375 = sadd.s32 %s373, %s374
      %s376 = smul.addr %s375, 8
      %s377 = scalar_lea.vmem %s7, %s376
      %s378 = smul.u32 8, %s23
      %v379 = vld [vmem:[%s356] sm:$0x1]
      %v380 = vld [vmem:[%s356 + $0x1] sm:$0x1]
      %vm381 = vcmask 1040384
      %v382 = vsel %vm381, %v379, 0.0
      %v383 = vsel %vm381, %v380, 0.0
      %v384 = vadd.f32 %v382, %v383
      %v385 = vmul.f32 %v384, 0.00390625
      %v386 = vld [vmem:[%s5 + $0x2] sm:$0x1]
      %v387 = vld [vmem:[%s5 + $0x3] sm:$0x1]
      %v388 = vld [vmem:[%s5 + $0x4] sm:$0x1]
      %v389 = vld [vmem:[%s5 + $0x5] sm:$0x1]
      %v390 = vld [vmem:[%s2] sm:$0xff]
      %v391 = vld [vmem:[%s2 + $0x8] sm:$0xff]
      %v392 = vld [vmem:[%s2 + $0x10] sm:$0xff]
      %v393 = vld [vmem:[%s2 + $0x18] sm:$0xff]
      %v394 = vld [vmem:[%s2 + $0x20] sm:$0xff]
      %v395 = vld [vmem:[%s2 + $0x28] sm:$0xff]
      %v396 = vld [vmem:[%s2 + $0x30] sm:$0xff]
      %v397 = vld [vmem:[%s2 + $0x38] sm:$0xff]
      %v398 = vld [vmem:[%s2 + $0x40] sm:$0xff]
      %v399 = vld [vmem:[%s2 + $0x48] sm:$0xff]
      %v400 = vld [vmem:[%s2 + $0x50] sm:$0xff]
      %v401 = vld [vmem:[%s2 + $0x58] sm:$0xff]
      %v402 = vld [vmem:[%s2 + $0x60] sm:$0xff]
      %v403 = vld [vmem:[%s2 + $0x68] sm:$0xff]
      %v404 = vld [vmem:[%s2 + $0x70] sm:$0xff]
      %v405 = vld [vmem:[%s2 + $0x78] sm:$0xff]
      %406 = vmatpush.msra.mxu0 %v405
      %407 = vmatpush.msra.mxu0 %v404
      %408 = vmatpush.msra.mxu0 %v403
      %409 = vmatpush.msra.mxu0 %v402
      %410 = vmatpush.msra.mxu0 %v401
      %411 = vmatpush.msra.mxu0 %v400
      %412 = vmatpush.msra.mxu0 %v399
      %413 = vmatpush.msra.mxu0 %v398
      %414 = vmatpush.msra.mxu0 %v397
      %415 = vmatpush.msra.mxu0 %v396
      %416 = vmatpush.msra.mxu0 %v395
      %417 = vmatpush.msra.mxu0 %v394
      %418 = vmatpush.msra.mxu0 %v393
      %419 = vmatpush.msra.mxu0 %v392
      %420 = vmatpush.msra.mxu0 %v391
      %421 = vmatpush.msra.mxu0 %v390
      %422 = vmatmul.f32.gmra.mxu0 %v385
      %v423 = vpop.f32.mrf.mxu0
      %v424 = vadd.f32 %v386, %v423
      %425 = vdwg.mxu0
      %v426 = vsub.f32 0.0, %v424
      %v427 = vmul.f32 %v426, 1.442695
      %v428 = vpow.pop %v427
      %v429 = vadd.f32 %v428, 1.0
      %v430 = vrcp.pop %v429
      %v431 = vmul.f32 %v424, %v430
      %v432 = vld [vmem:[%s3] sm:$0xff]
      %v433 = vld [vmem:[%s3 + $0x8] sm:$0xff]
      %v434 = vld [vmem:[%s3 + $0x10] sm:$0xff]
      %v435 = vld [vmem:[%s3 + $0x18] sm:$0xff]
      %v436 = vld [vmem:[%s3 + $0x20] sm:$0xff]
      %v437 = vld [vmem:[%s3 + $0x28] sm:$0xff]
      %v438 = vld [vmem:[%s3 + $0x30] sm:$0xff]
      %v439 = vld [vmem:[%s3 + $0x38] sm:$0xff]
      %v440 = vld [vmem:[%s3 + $0x40] sm:$0xff]
      %v441 = vld [vmem:[%s3 + $0x48] sm:$0xff]
      %v442 = vld [vmem:[%s3 + $0x50] sm:$0xff]
      %v443 = vld [vmem:[%s3 + $0x58] sm:$0xff]
      %v444 = vld [vmem:[%s3 + $0x60] sm:$0xff]
      %v445 = vld [vmem:[%s3 + $0x68] sm:$0xff]
      %v446 = vld [vmem:[%s3 + $0x70] sm:$0xff]
      %v447 = vld [vmem:[%s3 + $0x78] sm:$0xff]
      %448 = vmatpush.msra.mxu0 %v447
      %449 = vmatpush.msra.mxu0 %v446
      %450 = vmatpush.msra.mxu0 %v445
      %451 = vmatpush.msra.mxu0 %v444
      %452 = vmatpush.msra.mxu0 %v443
      %453 = vmatpush.msra.mxu0 %v442
      %454 = vmatpush.msra.mxu0 %v441
      %455 = vmatpush.msra.mxu0 %v440
      %456 = vmatpush.msra.mxu0 %v439
      %457 = vmatpush.msra.mxu0 %v438
      %458 = vmatpush.msra.mxu0 %v437
      %459 = vmatpush.msra.mxu0 %v436
      %460 = vmatpush.msra.mxu0 %v435
      %461 = vmatpush.msra.mxu0 %v434
      %462 = vmatpush.msra.mxu0 %v433
      %463 = vmatpush.msra.mxu0 %v432
      %464 = vmatmul.f32.gmra.mxu0 %v431
      %v465 = vpop.f32.mrf.mxu0
      %v466 = vadd.f32 %v387, %v465
      %467 = vdwg.mxu0
      %v468 = vsub.f32 0.0, %v466
      %v469 = vmul.f32 %v468, 1.442695
      %v470 = vpow.pop %v469
      %v471 = vadd.f32 %v470, 1.0
      %v472 = vrcp.pop %v471
      %v473 = vld [vmem:[%s351] sm:$0xf]
      %v474 = vld [vmem:[%s351 + $0x4] sm:$0xf]
      %v475 = vld [vmem:[%s351 + $0x8] sm:$0xf]
      %v476 = vld [vmem:[%s351 + $0xc] sm:$0xf]
      %v477 = vld [vmem:[%s351 + $0x10] sm:$0xf]
      %v478 = vld [vmem:[%s351 + $0x14] sm:$0xf]
      %v479 = vld [vmem:[%s351 + $0x18] sm:$0xf]
      %v480 = vld [vmem:[%s351 + $0x1c] sm:$0xf]
      %v481 = vld [vmem:[%s351 + $0x20] sm:$0xf]
      %v482 = vld [vmem:[%s351 + $0x24] sm:$0xf]
      %v483 = vld [vmem:[%s351 + $0x28] sm:$0xf]
      %v484 = vld [vmem:[%s351 + $0x2c] sm:$0xf]
      %v485 = vld [vmem:[%s351 + $0x30] sm:$0xf]
      %v486 = vld [vmem:[%s351 + $0x34] sm:$0xf]
      %v487 = vld [vmem:[%s351 + $0x38] sm:$0xf]
      %v488 = vld [vmem:[%s351 + $0x3c] sm:$0xf]
      %v489 = vunpack.c.l.bf16 %v473
      %v490 = vunpack.c.l.bf16 %v474
      %v491 = vunpack.c.l.bf16 %v475
      %v492 = vunpack.c.l.bf16 %v476
      %v493 = vunpack.c.l.bf16 %v477
      %v494 = vunpack.c.l.bf16 %v478
      %v495 = vunpack.c.l.bf16 %v479
      %v496 = vunpack.c.l.bf16 %v480
      %v497 = vunpack.c.l.bf16 %v481
      %v498 = vunpack.c.l.bf16 %v482
      %v499 = vunpack.c.l.bf16 %v483
      %v500 = vunpack.c.l.bf16 %v484
      %v501 = vunpack.c.l.bf16 %v485
      %v502 = vunpack.c.l.bf16 %v486
      %v503 = vunpack.c.l.bf16 %v487
      %v504 = vunpack.c.l.bf16 %v488
      %v505 = vperm.slane %v472, 0
      %v506 = vmul.f32 %v489, %v505
      %v507 = vmul.f32 %v490, %v505
      %v508 = vmul.f32 %v491, %v505
      %v509 = vmul.f32 %v492, %v505
      %v510 = vmul.f32 %v493, %v505
      %v511 = vmul.f32 %v494, %v505
      %v512 = vmul.f32 %v495, %v505
      %v513 = vmul.f32 %v496, %v505
      %v514 = vmul.f32 %v497, %v505
      %v515 = vmul.f32 %v498, %v505
      %v516 = vmul.f32 %v499, %v505
      %v517 = vmul.f32 %v500, %v505
      %v518 = vmul.f32 %v501, %v505
      %v519 = vmul.f32 %v502, %v505
      %v520 = vmul.f32 %v503, %v505
      %v521 = vmul.f32 %v504, %v505
      %v522 = vpack.c.bf16 %v507, %v506
      %v523 = vpack.c.bf16 %v509, %v508
      %v524 = vpack.c.bf16 %v511, %v510
      %v525 = vpack.c.bf16 %v513, %v512
      %v526 = vpack.c.bf16 %v515, %v514
      %v527 = vpack.c.bf16 %v517, %v516
      %v528 = vpack.c.bf16 %v519, %v518
      %v529 = vpack.c.bf16 %v521, %v520
      %v530 = vld [vmem:[%s4] sm:$0xf]
      %v531 = vld [vmem:[%s4 + $0x4] sm:$0xf]
      %v532 = vld [vmem:[%s4 + $0x8] sm:$0xf]
      %v533 = vld [vmem:[%s4 + $0xc] sm:$0xf]
      %v534 = vld [vmem:[%s4 + $0x10] sm:$0xf]
      %v535 = vld [vmem:[%s4 + $0x14] sm:$0xf]
      %v536 = vld [vmem:[%s4 + $0x18] sm:$0xf]
      %v537 = vld [vmem:[%s4 + $0x1c] sm:$0xf]
      %v538 = vld [vmem:[%s4 + $0x20] sm:$0xf]
      %v539 = vld [vmem:[%s4 + $0x24] sm:$0xf]
      %v540 = vld [vmem:[%s4 + $0x28] sm:$0xf]
      %v541 = vld [vmem:[%s4 + $0x2c] sm:$0xf]
      %v542 = vld [vmem:[%s4 + $0x30] sm:$0xf]
      %v543 = vld [vmem:[%s4 + $0x34] sm:$0xf]
      %v544 = vld [vmem:[%s4 + $0x38] sm:$0xf]
      %v545 = vld [vmem:[%s4 + $0x3c] sm:$0xf]
      %v562 = vunpack.c.l.b16 %v530
      %v563 = vunpack.c.l.b16 %v531
      %v564 = vunpack.c.l.b16 %v532
      %v565 = vunpack.c.l.b16 %v533
      %v566 = vunpack.c.l.b16 %v534
      %v567 = vunpack.c.l.b16 %v535
      %v568 = vunpack.c.l.b16 %v536
      %v569 = vunpack.c.l.b16 %v537
      %v570 = vunpack.c.l.b16 %v538
      %v571 = vunpack.c.l.b16 %v539
      %v572 = vunpack.c.l.b16 %v540
      %v573 = vunpack.c.l.b16 %v541
      %v574 = vunpack.c.l.b16 %v542
      %v575 = vunpack.c.l.b16 %v543
      %v576 = vunpack.c.l.b16 %v544
      %v577 = vunpack.c.l.b16 %v545
      %v578 = vpack.c.b16 %v563, %v562
      %v579 = vpack.c.b16 %v565, %v564
      %v580 = vpack.c.b16 %v567, %v566
      %v581 = vpack.c.b16 %v569, %v568
      %v582 = vpack.c.b16 %v571, %v570
      %v583 = vpack.c.b16 %v573, %v572
      %v584 = vpack.c.b16 %v575, %v574
      %v585 = vpack.c.b16 %v577, %v576
      %594 = vmatpush.bf16.msra.mxu0 %v585
      %595 = vmatpush.bf16.msra.mxu0 %v584
      %596 = vmatpush.bf16.msra.mxu0 %v583
      %597 = vmatpush.bf16.msra.mxu0 %v582
      %598 = vmatpush.bf16.msra.mxu0 %v581
      %599 = vmatpush.bf16.msra.mxu0 %v580
      %600 = vmatpush.bf16.msra.mxu0 %v579
      %601 = vmatpush.bf16.msra.mxu0 %v578
      %602 = vmatmul.bf16.gmra.mxu0 %v522
      %v603 = vpop.f32.mrf.mxu0
      %v604 = vadd.f32 0.0, %v603
      %v605 = vpop.f32.mrf.mxu0
      %v606 = vadd.f32 0.0, %v605
      %607 = vmatmul.bf16.gmra.mxu0 %v523
      %v608 = vpop.f32.mrf.mxu0
      %v609 = vadd.f32 0.0, %v608
      %v610 = vpop.f32.mrf.mxu0
      %v611 = vadd.f32 0.0, %v610
      %612 = vmatmul.bf16.gmra.mxu0 %v524
      %v613 = vpop.f32.mrf.mxu0
      %v614 = vadd.f32 0.0, %v613
      %v615 = vpop.f32.mrf.mxu0
      %v616 = vadd.f32 0.0, %v615
      %617 = vmatmul.bf16.gmra.mxu0 %v525
      %v618 = vpop.f32.mrf.mxu0
      %v619 = vadd.f32 0.0, %v618
      %v620 = vpop.f32.mrf.mxu0
      %v621 = vadd.f32 0.0, %v620
      %622 = vmatmul.bf16.gmra.mxu0 %v526
      %v623 = vpop.f32.mrf.mxu0
      %v624 = vadd.f32 0.0, %v623
      %v625 = vpop.f32.mrf.mxu0
      %v626 = vadd.f32 0.0, %v625
      %627 = vmatmul.bf16.gmra.mxu0 %v527
      %v628 = vpop.f32.mrf.mxu0
      %v629 = vadd.f32 0.0, %v628
      %v630 = vpop.f32.mrf.mxu0
      %v631 = vadd.f32 0.0, %v630
      %632 = vmatmul.bf16.gmra.mxu0 %v528
      %v633 = vpop.f32.mrf.mxu0
      %v634 = vadd.f32 0.0, %v633
      %v635 = vpop.f32.mrf.mxu0
      %v636 = vadd.f32 0.0, %v635
      %637 = vmatmul.bf16.gmra.mxu0 %v529
      %v638 = vpop.f32.mrf.mxu0
      %v639 = vadd.f32 0.0, %v638
      %v640 = vpop.f32.mrf.mxu0
      %v641 = vadd.f32 0.0, %v640
      %642 = vdwg.mxu0
      %v643 = vperm.slane %v388, 0
      %v644 = vmul.f32 %v604, %v643
      %v645 = vmul.f32 %v606, %v643
      %v646 = vmul.f32 %v609, %v643
      %v647 = vmul.f32 %v611, %v643
      %v648 = vmul.f32 %v614, %v643
      %v649 = vmul.f32 %v616, %v643
      %v650 = vmul.f32 %v619, %v643
      %v651 = vmul.f32 %v621, %v643
      %v652 = vmul.f32 %v624, %v643
      %v653 = vmul.f32 %v626, %v643
      %v654 = vmul.f32 %v629, %v643
      %v655 = vmul.f32 %v631, %v643
      %v656 = vmul.f32 %v634, %v643
      %v657 = vmul.f32 %v636, %v643
      %v658 = vmul.f32 %v639, %v643
      %v659 = vmul.f32 %v641, %v643
      %v660 = vperm.slane %v389, 0
      %v661 = vadd.f32 %v644, %v660
      %v662 = vadd.f32 %v645, %v660
      %v663 = vadd.f32 %v646, %v660
      %v664 = vadd.f32 %v647, %v660
      %v665 = vadd.f32 %v648, %v660
      %v666 = vadd.f32 %v649, %v660
      %v667 = vadd.f32 %v650, %v660
      %v668 = vadd.f32 %v651, %v660
      %v669 = vadd.f32 %v652, %v660
      %v670 = vadd.f32 %v653, %v660
      %v671 = vadd.f32 %v654, %v660
      %v672 = vadd.f32 %v655, %v660
      %v673 = vadd.f32 %v656, %v660
      %v674 = vadd.f32 %v657, %v660
      %v675 = vadd.f32 %v658, %v660
      %v676 = vadd.f32 %v659, %v660
      %v677 = vsub.f32 0.0, %v661
      %v678 = vsub.f32 0.0, %v662
      %v679 = vsub.f32 0.0, %v663
      %v680 = vsub.f32 0.0, %v664
      %v681 = vsub.f32 0.0, %v665
      %v682 = vsub.f32 0.0, %v666
      %v683 = vsub.f32 0.0, %v667
      %v684 = vsub.f32 0.0, %v668
      %v685 = vsub.f32 0.0, %v669
      %v686 = vsub.f32 0.0, %v670
      %v687 = vsub.f32 0.0, %v671
      %v688 = vsub.f32 0.0, %v672
      %v689 = vsub.f32 0.0, %v673
      %v690 = vsub.f32 0.0, %v674
      %v691 = vsub.f32 0.0, %v675
      %v692 = vsub.f32 0.0, %v676
      %v693 = vmul.f32 %v677, 1.442695
      %v694 = vpow.pop %v693
      %v695 = vmul.f32 %v678, 1.442695
      %v696 = vpow.pop %v695
      %v697 = vmul.f32 %v679, 1.442695
      %v698 = vpow.pop %v697
      %v699 = vmul.f32 %v680, 1.442695
      %v700 = vpow.pop %v699
      %v701 = vmul.f32 %v681, 1.442695
      %v702 = vpow.pop %v701
      %v703 = vmul.f32 %v682, 1.442695
      %v704 = vpow.pop %v703
      %v705 = vmul.f32 %v683, 1.442695
      %v706 = vpow.pop %v705
      %v707 = vmul.f32 %v684, 1.442695
      %v708 = vpow.pop %v707
      %v709 = vmul.f32 %v685, 1.442695
      %v710 = vpow.pop %v709
      %v711 = vmul.f32 %v686, 1.442695
      %v712 = vpow.pop %v711
      %v713 = vmul.f32 %v687, 1.442695
      %v714 = vpow.pop %v713
      %v715 = vmul.f32 %v688, 1.442695
      %v716 = vpow.pop %v715
      %v717 = vmul.f32 %v689, 1.442695
      %v718 = vpow.pop %v717
      %v719 = vmul.f32 %v690, 1.442695
      %v720 = vpow.pop %v719
      %v721 = vmul.f32 %v691, 1.442695
      %v722 = vpow.pop %v721
      %v723 = vmul.f32 %v692, 1.442695
      %v724 = vpow.pop %v723
      %v725 = vadd.f32 %v694, 1.0
      %v726 = vadd.f32 %v696, 1.0
      %v727 = vadd.f32 %v698, 1.0
      %v728 = vadd.f32 %v700, 1.0
      %v729 = vadd.f32 %v702, 1.0
      %v730 = vadd.f32 %v704, 1.0
      %v731 = vadd.f32 %v706, 1.0
      %v732 = vadd.f32 %v708, 1.0
      %v733 = vadd.f32 %v710, 1.0
      %v734 = vadd.f32 %v712, 1.0
      %v735 = vadd.f32 %v714, 1.0
      %v736 = vadd.f32 %v716, 1.0
      %v737 = vadd.f32 %v718, 1.0
      %v738 = vadd.f32 %v720, 1.0
      %v739 = vadd.f32 %v722, 1.0
      %v740 = vadd.f32 %v724, 1.0
      %v741 = vrcp.pop %v725
      %v742 = vrcp.pop %v726
      %v743 = vrcp.pop %v727
      %v744 = vrcp.pop %v728
      %v745 = vrcp.pop %v729
      %v746 = vrcp.pop %v730
      %v747 = vrcp.pop %v731
      %v748 = vrcp.pop %v732
      %v749 = vrcp.pop %v733
      %v750 = vrcp.pop %v734
      %v751 = vrcp.pop %v735
      %v752 = vrcp.pop %v736
      %v753 = vrcp.pop %v737
      %v754 = vrcp.pop %v738
      %v755 = vrcp.pop %v739
      %v756 = vrcp.pop %v740
      %v757 = vmul.f32 %v661, %v741
      %v758 = vmul.f32 %v662, %v742
      %v759 = vmul.f32 %v663, %v743
      %v760 = vmul.f32 %v664, %v744
      %v761 = vmul.f32 %v665, %v745
      %v762 = vmul.f32 %v666, %v746
      %v763 = vmul.f32 %v667, %v747
      %v764 = vmul.f32 %v668, %v748
      %v765 = vmul.f32 %v669, %v749
      %v766 = vmul.f32 %v670, %v750
      %v767 = vmul.f32 %v671, %v751
      %v768 = vmul.f32 %v672, %v752
      %v769 = vmul.f32 %v673, %v753
      %v770 = vmul.f32 %v674, %v754
      %v771 = vmul.f32 %v675, %v755
      %v772 = vmul.f32 %v676, %v756
      %v773 = vld [vmem:[%s366] sm:$0xff]
      %v774 = vld [vmem:[%s366 + $0x8] sm:$0xff]
      %v775 = vld [vmem:[%s366 + $0x10] sm:$0xff]
      %v776 = vld [vmem:[%s366 + $0x18] sm:$0xff]
      %v777 = vld [vmem:[%s366 + $0x20] sm:$0xff]
      %v778 = vld [vmem:[%s366 + $0x28] sm:$0xff]
      %v779 = vld [vmem:[%s366 + $0x30] sm:$0xff]
      %v780 = vld [vmem:[%s366 + $0x38] sm:$0xff]
      %v781 = vld [vmem:[%s366 + $0x40] sm:$0xff]
      %v782 = vld [vmem:[%s366 + $0x48] sm:$0xff]
      %v783 = vld [vmem:[%s366 + $0x50] sm:$0xff]
      %v784 = vld [vmem:[%s366 + $0x58] sm:$0xff]
      %v785 = vld [vmem:[%s366 + $0x60] sm:$0xff]
      %v786 = vld [vmem:[%s366 + $0x68] sm:$0xff]
      %v787 = vld [vmem:[%s366 + $0x70] sm:$0xff]
      %v788 = vld [vmem:[%s366 + $0x78] sm:$0xff]
      %v789 = vadd.f32 %v757, %v773
      %v790 = vadd.f32 %v758, %v774
      %v791 = vadd.f32 %v759, %v775
      %v792 = vadd.f32 %v760, %v776
      %v793 = vadd.f32 %v761, %v777
      %v794 = vadd.f32 %v762, %v778
      %v795 = vadd.f32 %v763, %v779
      %v796 = vadd.f32 %v764, %v780
      %v797 = vadd.f32 %v765, %v781
      %v798 = vadd.f32 %v766, %v782
      %v799 = vadd.f32 %v767, %v783
      %v800 = vadd.f32 %v768, %v784
      %v801 = vadd.f32 %v769, %v785
      %v802 = vadd.f32 %v770, %v786
      %v803 = vadd.f32 %v771, %v787
      %v804 = vadd.f32 %v772, %v788
      %805 = vst [vmem:[%s377] sm:$0xff] %v789
      %806 = vst [vmem:[%s377 + $0x8] sm:$0xff] %v790
      %807 = vst [vmem:[%s377 + $0x10] sm:$0xff] %v791
      %808 = vst [vmem:[%s377 + $0x18] sm:$0xff] %v792
      %809 = vst [vmem:[%s377 + $0x20] sm:$0xff] %v793
      %810 = vst [vmem:[%s377 + $0x28] sm:$0xff] %v794
      %811 = vst [vmem:[%s377 + $0x30] sm:$0xff] %v795
      %812 = vst [vmem:[%s377 + $0x38] sm:$0xff] %v796
      %813 = vst [vmem:[%s377 + $0x40] sm:$0xff] %v797
      %814 = vst [vmem:[%s377 + $0x48] sm:$0xff] %v798
      %815 = vst [vmem:[%s377 + $0x50] sm:$0xff] %v799
      %816 = vst [vmem:[%s377 + $0x58] sm:$0xff] %v800
      %817 = vst [vmem:[%s377 + $0x60] sm:$0xff] %v801
      %818 = vst [vmem:[%s377 + $0x68] sm:$0xff] %v802
      %819 = vst [vmem:[%s377 + $0x70] sm:$0xff] %v803
      %820 = vst [vmem:[%s377 + $0x78] sm:$0xff] %v804
      %s821 = smul.u32 8, %s23
      %p822 = scmp.lt.s32.totalorder %s22, 1
      %s823 = scalar_select %p822, %s22, 1
      %p824 = scmp.lt.s32.totalorder %s821, 15
      %s825 = scalar_select %p824, %s821, 15
      %s826 = smul.addr %s825, 2
      %s827 = smul.addr %s823, 32
      %s828 = sadd.s32 %s826, %s827
      %s829 = smul.addr %s828, 8
      %s830 = scalar_lea.vmem %s7, %s829
      // Predicated region
      $region49: #{_lambda_.3} parent=47 // pred_check
        %p831 = pneg %p216
      $region50: #{_lambda_.3} parent=47 // pred_check_branch
        %833 = sbr.rel (%p831) target = $region52
      $region51: #{_lambda_.3} parent=47 // pred_region
        %s834 = smul.u32 8, %s23
      $region52: #{_lambda_.3} parent=47 // pred_fallthru
        _
    $region48: #{_lambda_.3} parent=5 // pred_fallthru
      _
    %p835 = scmp.le.s32.totalorder 2, %s13
    // Predicated region
    $region53: #{_lambda_.3} parent=5 // pred_check
      %p836 = pneg %p835
    $region54: #{_lambda_.3} parent=5 // pred_check_branch
      %838 = sbr.rel (%p836) target = $region56
    $region55: #{_lambda_.3} parent=5 // pred_region
      %s839 = ssub.s32 %s13, 2
      // Predicated region
      $region57: #{_lambda_.3} parent=55 // pred_check
        %p840 = pneg %p222
      $region58: #{_lambda_.3} parent=55 // pred_check_branch
        %842 = sbr.rel (%p840) target = $region60
      $region59: #{_lambda_.3} parent=55 // pred_region
        %s843 = smul.u32 8, %s25
        %p844 = scmp.lt.s32.totalorder %s24, 1
        %s845 = scalar_select %p844, %s24, 1
        %p846 = scmp.lt.s32.totalorder %s843, 15
        %s847 = scalar_select %p846, %s843, 15
        %s848 = smul.addr %s847, 2
        %s849 = smul.addr %s845, 32
        %s850 = sadd.s32 %s848, %s849
        %s851 = smul.addr %s850, 8
        %s852 = scalar_lea.vmem %s7, %s851
      $region60: #{_lambda_.3} parent=55 // pred_fallthru
        _
    $region56: #{_lambda_.3} parent=5 // pred_fallthru
      _
  $region6: #{_lambda_.3} parent=0 // loop_footer
    %s17 = sadd.s32 1, %s13
  $region7: #{_lambda_.3} parent=0 // loop_footer_branch
    %12 = sbr.rel target = $region3
  $region8: #{_lambda_.3} parent=0 // loop_exit
    _

// kernel: _lambda_.2
$region0: #{_lambda_.2}
  #allocation0 [shape = 'u32[]', space=smem, size = 0x4, offset = 0x4, fixed_abs, tag = 'smem constant byte address 0x4 - core index']
  #allocation1 [shape = 'u32[72,128]{1,0:T(1,128)}', space=vmem, size = 0x9000, scoped, tag = 'internal scratch']
  %s0 = inlined_call_operand.vmem [shape: bf16[2,18,18,128], index: 0, kind: input, shape index: {}]
  %s1 = inlined_call_operand.vmem [shape: bf16[1152,128], index: 1, kind: input, shape index: {}]
  %s2 = inlined_call_operand.vmem [shape: f32[8,128], index: 2, kind: input, shape index: {}]
  %s3 = inlined_call_operand.vmem [shape: bf16[2,16,16,128], index: 3, kind: output, shape index: {0}]
  %s4 = inlined_call_operand.vmem [shape: f32[2,2,1,128], index: 4, kind: output, shape index: {1}]
  %5 = xla_tuple %s3, %s4
  %s6 = sld [smem:[#allocation0]]
  $region53: #{_lambda_.2} parent=0
    _
  %s8 = ssub.s32 1, %s6
  %s9 = scalar_select 0, %s8, %s6
  loop: start=0, step=1, limit=6
  $region2: #{_lambda_.2} parent=0 // loop_pre_header
    _
  $region3: #{_lambda_.2} parent=0 // loop_header
    %s11 = sphi 0, %s15
    %p12 = scmp.ge.s32.totalorder %s11, 6
    %s18 = sphi 0, %s30
    %s19 = sphi 0, %s26
    %s20 = sphi 0, %s18
    %s21 = sphi 0, %s19
    %s22 = sphi 0, %s20
    %s23 = sphi 0, %s21
    %s33 = sphi 0, %s35
    %s36 = sphi 0, %s33
    %s37 = sphi 0, %s36
    %s53 = sphi 0, %s37
    %s57 = sphi 0, %s57
    %s59 = sphi 0, %s57
    %s60 = sphi 0, %s59
    %s74 = sphi 0, %s60
    %s78 = sphi 0, %s78
    %s80 = sphi 0, %s78
    %s81 = sphi 0, %s80
    %s95 = sphi 0, %s81
    %s103 = sphi 0, %s105
    %s106 = sphi 0, %s103
    %s107 = sphi 0, %s106
    %s123 = sphi 0, %s107
    %s131 = sphi 0, %s133
    %s134 = sphi 0, %s131
    %s135 = sphi 0, %s134
    %s151 = sphi 0, %s135
  $region4: #{_lambda_.2} parent=0 // loop_header_branch
    %14 = sbr.rel (%p12) target = $region8
  $region5: #{_lambda_.2} parent=0 // loop_body
    %s16 = ssub.s32 %s11, 1
    %s17 = ssub.s32 %s11, 2
    %s24 = sadd.s32 1, %s19
    %p25 = scmp.ge.s32.totalorder %s24, 2
    %s26 = scalar_select %p25, 0, %s24
    %s27 = sadd.s32 1, %s18
    %s28 = scalar_select %p25, %s27, %s18
    %p29 = scmp.ge.s32.totalorder %s28, 2
    %s30 = scalar_select %p29, 0, %s28
    %s31 = ssub.s32 %s18, %s30
    %p32 = scmp.eq.s32.totalorder %s31, 0
    %s34 = sadd.s32 %s33, 1
    %s35 = scalar_select %p32, %s33, %s34
    %p38 = pneg %p32
    %p39 = scmp.eq.s32.totalorder %s11, 3
    %p40 = por %p38, %p39
    %p41 = scmp.ne.s32.totalorder %s33, %s36
    %p42 = scmp.eq.s32.totalorder %s11, 0
    %p43 = por %p41, %p42
    %p44 = scmp.ne.s32.totalorder %s33, %s36
    %p45 = scmp.eq.s32.totalorder %s16, 3
    %p46 = por %p44, %p45
    %p47 = scmp.ne.s32.totalorder %s36, %s37
    %p48 = scmp.eq.s32.totalorder %s16, 0
    %p49 = por %p47, %p48
    %p50 = scmp.ne.s32.totalorder %s36, %s37
    %p51 = scmp.eq.s32.totalorder %s17, 3
    %p52 = por %p50, %p51
    %p54 = scmp.ne.s32.totalorder %s37, %s53
    %p55 = scmp.eq.s32.totalorder %s17, 0
    %p56 = por %p54, %p55
    %s58 = sadd.s32 %s57, 1
    %p61 = scmp.eq.s32.totalorder %s11, 3
    %p62 = scmp.ne.s32.totalorder %s57, %s59
    %p63 = scmp.eq.s32.totalorder %s11, 0
    %p64 = por %p62, %p63
    %p65 = scmp.ne.s32.totalorder %s57, %s59
    %p66 = scmp.eq.s32.totalorder %s16, 3
    %p67 = por %p65, %p66
    %p68 = scmp.ne.s32.totalorder %s59, %s60
    %p69 = scmp.eq.s32.totalorder %s16, 0
    %p70 = por %p68, %p69
    %p71 = scmp.ne.s32.totalorder %s59, %s60
    %p72 = scmp.eq.s32.totalorder %s17, 3
    %p73 = por %p71, %p72
    %p75 = scmp.ne.s32.totalorder %s60, %s74
    %p76 = scmp.eq.s32.totalorder %s17, 0
    %p77 = por %p75, %p76
    %s79 = sadd.s32 %s78, 1
    %p82 = scmp.eq.s32.totalorder %s11, 3
    %p83 = scmp.ne.s32.totalorder %s78, %s80
    %p84 = scmp.eq.s32.totalorder %s11, 0
    %p85 = por %p83, %p84
    %p86 = scmp.ne.s32.totalorder %s78, %s80
    %p87 = scmp.eq.s32.totalorder %s16, 3
    %p88 = por %p86, %p87
    %p89 = scmp.ne.s32.totalorder %s80, %s81
    %p90 = scmp.eq.s32.totalorder %s16, 0
    %p91 = por %p89, %p90
    %p92 = scmp.ne.s32.totalorder %s80, %s81
    %p93 = scmp.eq.s32.totalorder %s17, 3
    %p94 = por %p92, %p93
    %p96 = scmp.ne.s32.totalorder %s81, %s95
    %p97 = scmp.eq.s32.totalorder %s17, 0
    %p98 = por %p96, %p97
    %s99 = ssub.s32 %s18, %s30
    %s100 = ssub.s32 %s19, %s26
    %s101 = sor.u32 %s99, %s100
    %p102 = scmp.eq.s32.totalorder %s101, 0
    %s104 = sadd.s32 %s103, 1
    %s105 = scalar_select %p102, %s103, %s104
    %p108 = pneg %p102
    %p109 = scmp.eq.s32.totalorder %s11, 3
    %p110 = por %p108, %p109
    %p111 = scmp.ne.s32.totalorder %s103, %s106
    %p112 = scmp.eq.s32.totalorder %s11, 0
    %p113 = por %p111, %p112
    %p114 = scmp.ne.s32.totalorder %s103, %s106
    %p115 = scmp.eq.s32.totalorder %s16, 3
    %p116 = por %p114, %p115
    %p117 = scmp.ne.s32.totalorder %s106, %s107
    %p118 = scmp.eq.s32.totalorder %s16, 0
    %p119 = por %p117, %p118
    %p120 = scmp.ne.s32.totalorder %s106, %s107
    %p121 = scmp.eq.s32.totalorder %s17, 3
    %p122 = por %p120, %p121
    %p124 = scmp.ne.s32.totalorder %s107, %s123
    %p125 = scmp.eq.s32.totalorder %s17, 0
    %p126 = por %p124, %p125
    %s127 = ssub.s32 %s18, %s30
    %s128 = ssub.s32 %s19, %s26
    %s129 = sor.u32 %s127, %s128
    %p130 = scmp.eq.s32.totalorder %s129, 0
    %s132 = sadd.s32 %s131, 1
    %s133 = scalar_select %p130, %s131, %s132
    %p136 = pneg %p130
    %p137 = scmp.eq.s32.totalorder %s11, 3
    %p138 = por %p136, %p137
    %p139 = scmp.ne.s32.totalorder %s131, %s134
    %p140 = scmp.eq.s32.totalorder %s11, 0
    %p141 = por %p139, %p140
    %p142 = scmp.ne.s32.totalorder %s131, %s134
    %p143 = scmp.eq.s32.totalorder %s16, 3
    %p144 = por %p142, %p143
    %p145 = scmp.ne.s32.totalorder %s134, %s135
    %p146 = scmp.eq.s32.totalorder %s16, 0
    %p147 = por %p145, %p146
    %p148 = scmp.ne.s32.totalorder %s134, %s135
    %p149 = scmp.eq.s32.totalorder %s17, 3
    %p150 = por %p148, %p149
    %p152 = scmp.ne.s32.totalorder %s135, %s151
    %p153 = scmp.eq.s32.totalorder %s17, 0
    %p154 = por %p152, %p153
    %p155 = scmp.le.s32.totalorder 1, %s11
    %p156 = scmp.lt.s32.totalorder %s11, 5
    %p157 = pnand %p155, %p156
    %p158 = pneg %p157
    // Predicated region
    $region9: #{_lambda_.2} parent=5 // pred_check
      _
    $region10: #{_lambda_.2} parent=5 // pred_check_branch
      %160 = sbr.rel (%p157) target = $region12
    $region11: #{_lambda_.2} parent=5 // pred_region
      %s161 = ssub.s32 %s11, 1
      // Predicated region
      $region13: #{_lambda_.2} parent=11 // pred_check
        %p162 = pneg %p70
      $region14: #{_lambda_.2} parent=11 // pred_check_branch
        %164 = sbr.rel (%p162) target = $region16
      $region15: #{_lambda_.2} parent=11 // pred_region
        _
      $region16: #{_lambda_.2} parent=11 // pred_fallthru
        _
      // Predicated region
      $region17: #{_lambda_.2} parent=11 // pred_check
        %p165 = pneg %p91
      $region18: #{_lambda_.2} parent=11 // pred_check_branch
        %167 = sbr.rel (%p165) target = $region20
      $region19: #{_lambda_.2} parent=11 // pred_region
        _
      $region20: #{_lambda_.2} parent=11 // pred_fallthru
        _
    $region12: #{_lambda_.2} parent=5 // pred_fallthru
      _
    %p168 = scmp.lt.s32.totalorder %s11, 4
    // Predicated region
    $region21: #{_lambda_.2} parent=5 // pred_check
      %p169 = pneg %p168
    $region22: #{_lambda_.2} parent=5 // pred_check_branch
      %171 = sbr.rel (%p169) target = $region24
    $region23: #{_lambda_.2} parent=5 // pred_region
      // Predicated region
      $region25: #{_lambda_.2} parent=23 // pred_check
        %p172 = pneg %p43
      $region26: #{_lambda_.2} parent=23 // pred_check_branch
        %174 = sbr.rel (%p172) target = $region28
      $region27: #{_lambda_.2} parent=23 // pred_region
        %p175 = scmp.lt.s32.totalorder %s18, 1
        %s176 = scalar_select %p175, %s18, 1
        %s177 = smul.addr %s176, 54
        %s178 = smul.addr %s177, 4
        %s179 = scalar_lea.vmem %s0, %s178
      $region28: #{_lambda_.2} parent=23 // pred_fallthru
        _
    $region24: #{_lambda_.2} parent=5 // pred_fallthru
      _
    %p180 = scmp.le.s32.totalorder 1, %s11
    %p181 = scmp.lt.s32.totalorder %s11, 5
    %p182 = pnand %p180, %p181
    %p183 = pneg %p182
    // Predicated region
    $region29: #{_lambda_.2} parent=5 // pred_check
      _
    $region30: #{_lambda_.2} parent=5 // pred_check_branch
      %185 = sbr.rel (%p182) target = $region32
    $region31: #{_lambda_.2} parent=5 // pred_region
      %s186 = ssub.s32 %s11, 1
      %p187 = scmp.lt.s32.totalorder %s20, 1
      %s188 = scalar_select %p187, %s20, 1
      %s189 = smul.addr %s188, 54
      %s190 = smul.addr %s189, 4
      %s191 = scalar_lea.vmem %s0, %s190
      %p192 = pneg %p49
      %p193 = pneg %p46
      %p194 = pneg %p70
      %p195 = pneg %p67
      %p196 = pneg %p91
      %p197 = pneg %p88
      %p198 = pneg %p119
      %p199 = pneg %p116
      %s200 = smul.u32 8, %s21
      %p201 = scmp.lt.s32.totalorder %s20, 1
      %s202 = scalar_select %p201, %s20, 1
      %p203 = scmp.lt.s32.totalorder %s200, 15
      %s204 = scalar_select %p203, %s200, 15
      %s205 = smul.addr %s204, 2
      %s206 = smul.addr %s202, 32
      %s207 = sadd.s32 %s205, %s206
      %s208 = smul.addr %s207, 4
      %s209 = scalar_lea.vmem %s3, %s208
      %p210 = pneg %p147
      %p211 = pneg %p144
      %p212 = scmp.lt.s32.totalorder %s20, 1
      %s213 = scalar_select %p212, %s20, 1
      %p214 = scmp.lt.s32.totalorder %s21, 1
      %s215 = scalar_select %p214, %s21, 1
      %s216 = smul.addr %s213, 2
      %s217 = sadd.s32 %s215, %s216
      %s218 = scalar_lea.vmem %s4, %s217
      %p219 = scmp.lt.s32.totalorder %s20, 1
      %s220 = scalar_select %p219, %s20, 1
      %s221 = smul.addr %s220, 54
      %s222 = smul.addr %s221, 4
      %s223 = scalar_lea.vmem %s0, %s222
      %s224 = smul.u32 8, %s21
      %p225 = scmp.lt.s32.totalorder %s20, 1
      %s226 = scalar_select %p225, %s20, 1
      %p227 = scmp.lt.s32.totalorder %s224, 15
      %s228 = scalar_select %p227, %s224, 15
      %s229 = smul.addr %s228, 2
      %s230 = smul.addr %s226, 32
      %s231 = sadd.s32 %s229, %s230
      %s232 = smul.addr %s231, 4
      %s233 = scalar_lea.vmem %s3, %s232
      %s234 = smul.u32 8, %s21
      %p235 = scmp.lt.s32.totalorder %s20, 1
      %s236 = scalar_select %p235, %s20, 1
      %p237 = scmp.lt.s32.totalorder %s21, 1
      %s238 = scalar_select %p237, %s21, 1
      %s239 = smul.addr %s236, 2
      %s240 = sadd.s32 %s238, %s239
      %s241 = scalar_lea.vmem %s4, %s240
      %s242 = smul.u32 %s21, 8
      %s243 = smul.u32 %s242, 3
      %s244 = smul.addr %s243, 4
      %s245 = scalar_lea.vmem %s223, %s244
      %v246 = vld [vmem:[%s245] sm:$0xf]
      %v247 = vld [vmem:[%s245 + $0x4] sm:$0xf]
      %v248 = vld [vmem:[%s245 + $0x8] sm:$0x1]
      %v249 = vld [vmem:[%s245 + $0xc] sm:$0xf]
      %v250 = vld [vmem:[%s245 + $0x10] sm:$0xf]
      %v251 = vld [vmem:[%s245 + $0x14] sm:$0x1]
      %v252 = vld [vmem:[%s245 + $0x18] sm:$0xf]
      %v253 = vld [vmem:[%s245 + $0x1c] sm:$0xf]
      %v254 = vld [vmem:[%s245 + $0x20] sm:$0x1]
      %v255 = vld [vmem:[%s245 + $0x24] sm:$0xf]
      %v256 = vld [vmem:[%s245 + $0x28] sm:$0xf]
      %v257 = vld [vmem:[%s245 + $0x2c] sm:$0x1]
      %v258 = vld [vmem:[%s245 + $0x30] sm:$0xf]
      %v259 = vld [vmem:[%s245 + $0x34] sm:$0xf]
      %v260 = vld [vmem:[%s245 + $0x38] sm:$0x1]
      %v261 = vld [vmem:[%s245 + $0x3c] sm:$0xf]
      %v262 = vld [vmem:[%s245 + $0x40] sm:$0xf]
      %v263 = vld [vmem:[%s245 + $0x44] sm:$0x1]
      %v264 = vld [vmem:[%s245 + $0x48] sm:$0xf]
      %v265 = vld [vmem:[%s245 + $0x4c] sm:$0xf]
      %v266 = vld [vmem:[%s245 + $0x50] sm:$0x1]
      %v267 = vld [vmem:[%s245 + $0x54] sm:$0xf]
      %v268 = vld [vmem:[%s245 + $0x58] sm:$0xf]
      %v269 = vld [vmem:[%s245 + $0x5c] sm:$0x1]
      %s270 = sadd.s32 %s242, 1
      %s271 = smul.u32 %s270, 3
      %s272 = smul.addr %s271, 4
      %s273 = scalar_lea.vmem %s223, %s272
      %v274 = vld [vmem:[%s273] sm:$0xf]
      %v275 = vld [vmem:[%s273 + $0x4] sm:$0xf]
      %v276 = vld [vmem:[%s273 + $0x8] sm:$0x1]
      %v277 = vld [vmem:[%s273 + $0xc] sm:$0xf]
      %v278 = vld [vmem:[%s273 + $0x10] sm:$0xf]
      %v279 = vld [vmem:[%s273 + $0x14] sm:$0x1]
      %v280 = vld [vmem:[%s273 + $0x18] sm:$0xf]
      %v281 = vld [vmem:[%s273 + $0x1c] sm:$0xf]
      %v282 = vld [vmem:[%s273 + $0x20] sm:$0x1]
      %v283 = vld [vmem:[%s273 + $0x24] sm:$0xf]
      %v284 = vld [vmem:[%s273 + $0x28] sm:$0xf]
      %v285 = vld [vmem:[%s273 + $0x2c] sm:$0x1]
      %v286 = vld [vmem:[%s273 + $0x30] sm:$0xf]
      %v287 = vld [vmem:[%s273 + $0x34] sm:$0xf]
      %v288 = vld [vmem:[%s273 + $0x38] sm:$0x1]
      %v289 = vld [vmem:[%s273 + $0x3c] sm:$0xf]
      %v290 = vld [vmem:[%s273 + $0x40] sm:$0xf]
      %v291 = vld [vmem:[%s273 + $0x44] sm:$0x1]
      %v292 = vld [vmem:[%s273 + $0x48] sm:$0xf]
      %v293 = vld [vmem:[%s273 + $0x4c] sm:$0xf]
      %v294 = vld [vmem:[%s273 + $0x50] sm:$0x1]
      %v295 = vld [vmem:[%s273 + $0x54] sm:$0xf]
      %v296 = vld [vmem:[%s273 + $0x58] sm:$0xf]
      %v297 = vld [vmem:[%s273 + $0x5c] sm:$0x1]
      %s298 = sadd.s32 %s242, 2
      %s299 = smul.u32 %s298, 3
      %s300 = smul.addr %s299, 4
      %s301 = scalar_lea.vmem %s223, %s300
      %v302 = vld [vmem:[%s301] sm:$0xf]
      %v303 = vld [vmem:[%s301 + $0x4] sm:$0xf]
      %v304 = vld [vmem:[%s301 + $0x8] sm:$0x1]
      %v305 = vld [vmem:[%s301 + $0xc] sm:$0xf]
      %v306 = vld [vmem:[%s301 + $0x10] sm:$0xf]
      %v307 = vld [vmem:[%s301 + $0x14] sm:$0x1]
      %v308 = vld [vmem:[%s301 + $0x18] sm:$0xf]
      %v309 = vld [vmem:[%s301 + $0x1c] sm:$0xf]
      %v310 = vld [vmem:[%s301 + $0x20] sm:$0x1]
      %v311 = vld [vmem:[%s301 + $0x24] sm:$0xf]
      %v312 = vld [vmem:[%s301 + $0x28] sm:$0xf]
      %v313 = vld [vmem:[%s301 + $0x2c] sm:$0x1]
      %v314 = vld [vmem:[%s301 + $0x30] sm:$0xf]
      %v315 = vld [vmem:[%s301 + $0x34] sm:$0xf]
      %v316 = vld [vmem:[%s301 + $0x38] sm:$0x1]
      %v317 = vld [vmem:[%s301 + $0x3c] sm:$0xf]
      %v318 = vld [vmem:[%s301 + $0x40] sm:$0xf]
      %v319 = vld [vmem:[%s301 + $0x44] sm:$0x1]
      %v320 = vld [vmem:[%s301 + $0x48] sm:$0xf]
      %v321 = vld [vmem:[%s301 + $0x4c] sm:$0xf]
      %v322 = vld [vmem:[%s301 + $0x50] sm:$0x1]
      %v323 = vld [vmem:[%s301 + $0x54] sm:$0xf]
      %v324 = vld [vmem:[%s301 + $0x58] sm:$0xf]
      %v325 = vld [vmem:[%s301 + $0x5c] sm:$0x1]
      %v342 = vunpack.c.l.b16 %v246
      %v343 = vunpack.c.l.b16 %v247
      %v344 = vunpack.c.l.b16 %v249
      %v345 = vunpack.c.l.b16 %v250
      %v346 = vunpack.c.l.b16 %v252
      %v347 = vunpack.c.l.b16 %v253
      %v348 = vunpack.c.l.b16 %v255
      %v349 = vunpack.c.l.b16 %v256
      %v350 = vunpack.c.l.b16 %v258
      %v351 = vunpack.c.l.b16 %v259
      %v352 = vunpack.c.l.b16 %v261
      %v353 = vunpack.c.l.b16 %v262
      %v354 = vunpack.c.l.b16 %v264
      %v355 = vunpack.c.l.b16 %v265
      %v356 = vunpack.c.l.b16 %v267
      %v357 = vunpack.c.l.b16 %v268
      %v358 = vpack.c.b16 %v343, %v342
      %v359 = vpack.c.b16 %v345, %v344
      %v360 = vpack.c.b16 %v347, %v346
      %v361 = vpack.c.b16 %v349, %v348
      %v362 = vpack.c.b16 %v351, %v350
      %v363 = vpack.c.b16 %v353, %v352
      %v364 = vpack.c.b16 %v355, %v354
      %v365 = vpack.c.b16 %v357, %v356
      %v382 = vunpack.c.l.b16 %v248
      %v383 = vunpack.c.l.b16 %v251
      %v384 = vunpack.c.l.b16 %v254
      %v385 = vunpack.c.l.b16 %v257
      %v386 = vunpack.c.l.b16 %v260
      %v387 = vunpack.c.l.b16 %v263
      %v388 = vunpack.c.l.b16 %v266
      %v389 = vunpack.c.l.b16 %v269
      %v390 = vpack.c.b16 %v382, %v382
      %v391 = vpack.c.b16 %v383, %v383
      %v392 = vpack.c.b16 %v384, %v384
      %v393 = vpack.c.b16 %v385, %v385
      %v394 = vpack.c.b16 %v386, %v386
      %v395 = vpack.c.b16 %v387, %v387
      %v396 = vpack.c.b16 %v388, %v388
      %v397 = vpack.c.b16 %v389, %v389
      %vm398 = vsmask.f32 7424
      %v400 = vshrl.u32 %v358, 16
      %v402 = vshll.u32 %v358, 16
      %v404 = vrot.slane %v402, 1
      %v405 = vor.u32 %v400, %v404
      %v407 = vshll.u32 %v390, 16
      %v409 = vrot.slane %v407, 1
      %v410 = vsel %vm398, %v405, %v409
      %v412 = vshrl.u32 %v359, 16
      %v414 = vshll.u32 %v359, 16
      %v416 = vrot.slane %v414, 1
      %v417 = vor.u32 %v412, %v416
      %v419 = vshll.u32 %v391, 16
      %v421 = vrot.slane %v419, 1
      %v422 = vsel %vm398, %v417, %v421
      %v424 = vshrl.u32 %v360, 16
      %v426 = vshll.u32 %v360, 16
      %v428 = vrot.slane %v426, 1
      %v429 = vor.u32 %v424, %v428
      %v431 = vshll.u32 %v392, 16
      %v433 = vrot.slane %v431, 1
      %v434 = vsel %vm398, %v429, %v433
      %v436 = vshrl.u32 %v361, 16
      %v438 = vshll.u32 %v361, 16
      %v440 = vrot.slane %v438, 1
      %v441 = vor.u32 %v436, %v440
      %v443 = vshll.u32 %v393, 16
      %v445 = vrot.slane %v443, 1
      %v446 = vsel %vm398, %v441, %v445
      %v448 = vshrl.u32 %v362, 16
      %v450 = vshll.u32 %v362, 16
      %v452 = vrot.slane %v450, 1
      %v453 = vor.u32 %v448, %v452
      %v455 = vshll.u32 %v394, 16
      %v457 = vrot.slane %v455, 1
      %v458 = vsel %vm398, %v453, %v457
      %v460 = vshrl.u32 %v363, 16
      %v462 = vshll.u32 %v363, 16
      %v464 = vrot.slane %v462, 1
      %v465 = vor.u32 %v460, %v464
      %v467 = vshll.u32 %v395, 16
      %v469 = vrot.slane %v467, 1
      %v470 = vsel %vm398, %v465, %v469
      %v472 = vshrl.u32 %v364, 16
      %v474 = vshll.u32 %v364, 16
      %v476 = vrot.slane %v474, 1
      %v477 = vor.u32 %v472, %v476
      %v479 = vshll.u32 %v396, 16
      %v481 = vrot.slane %v479, 1
      %v482 = vsel %vm398, %v477, %v481
      %v484 = vshrl.u32 %v365, 16
      %v486 = vshll.u32 %v365, 16
      %v488 = vrot.slane %v486, 1
      %v489 = vor.u32 %v484, %v488
      %v491 = vshll.u32 %v397, 16
      %v493 = vrot.slane %v491, 1
      %v494 = vsel %vm398, %v489, %v493
      %vm503 = vcmask 1046528
      %v504 = vrot.slane %v358, 1
      %v505 = vrot.slane %v390, 1
      %v506 = vsel %vm503, %v504, %v505
      %v507 = vrot.slane %v359, 1
      %v508 = vrot.slane %v391, 1
      %v509 = vsel %vm503, %v507, %v508
      %v510 = vrot.slane %v360, 1
      %v511 = vrot.slane %v392, 1
      %v512 = vsel %vm503, %v510, %v511
      %v513 = vrot.slane %v361, 1
      %v514 = vrot.slane %v393, 1
      %v515 = vsel %vm503, %v513, %v514
      %v516 = vrot.slane %v362, 1
      %v517 = vrot.slane %v394, 1
      %v518 = vsel %vm503, %v516, %v517
      %v519 = vrot.slane %v363, 1
      %v520 = vrot.slane %v395, 1
      %v521 = vsel %vm503, %v519, %v520
      %v522 = vrot.slane %v364, 1
      %v523 = vrot.slane %v396, 1
      %v524 = vsel %vm503, %v522, %v523
      %v525 = vrot.slane %v365, 1
      %v526 = vrot.slane %v397, 1
      %v527 = vsel %vm503, %v525, %v526
      %v552 = vunpack.c.l.b16 %v274
      %v553 = vunpack.c.l.b16 %v275
      %v554 = vunpack.c.l.b16 %v277
      %v555 = vunpack.c.l.b16 %v278
      %v556 = vunpack.c.l.b16 %v280
      %v557 = vunpack.c.l.b16 %v281
      %v558 = vunpack.c.l.b16 %v283
      %v559 = vunpack.c.l.b16 %v284
      %v560 = vunpack.c.l.b16 %v286
      %v561 = vunpack.c.l.b16 %v287
      %v562 = vunpack.c.l.b16 %v289
      %v563 = vunpack.c.l.b16 %v290
      %v564 = vunpack.c.l.b16 %v292
      %v565 = vunpack.c.l.b16 %v293
      %v566 = vunpack.c.l.b16 %v295
      %v567 = vunpack.c.l.b16 %v296
      %v568 = vpack.c.b16 %v553, %v552
      %v569 = vpack.c.b16 %v555, %v554
      %v570 = vpack.c.b16 %v557, %v556
      %v571 = vpack.c.b16 %v559, %v558
      %v572 = vpack.c.b16 %v561, %v560
      %v573 = vpack.c.b16 %v563, %v562
      %v574 = vpack.c.b16 %v565, %v564
      %v575 = vpack.c.b16 %v567, %v566
      %v592 = vunpack.c.l.b16 %v276
      %v593 = vunpack.c.l.b16 %v279
      %v594 = vunpack.c.l.b16 %v282
      %v595 = vunpack.c.l.b16 %v285
      %v596 = vunpack.c.l.b16 %v288
      %v597 = vunpack.c.l.b16 %v291
      %v598 = vunpack.c.l.b16 %v294
      %v599 = vunpack.c.l.b16 %v297
      %v600 = vpack.c.b16 %v592, %v592
      %v601 = vpack.c.b16 %v593, %v593
      %v602 = vpack.c.b16 %v594, %v594
      %v603 = vpack.c.b16 %v595, %v595
      %v604 = vpack.c.b16 %v596, %v596
      %v605 = vpack.c.b16 %v597, %v597
      %v606 = vpack.c.b16 %v598, %v598
      %v607 = vpack.c.b16 %v599, %v599
      %v609 = vshrl.u32 %v568, 16
      %v611 = vshll.u32 %v568, 16
      %v613 = vrot.slane %v611, 1
      %v614 = vor.u32 %v609, %v613
      %v616 = vshll.u32 %v600, 16
      %v618 = vrot.slane %v616, 1
      %v619 = vsel %vm398, %v614, %v618
      %v621 = vshrl.u32 %v569, 16
      %v623 = vshll.u32 %v569, 16
      %v625 = vrot.slane %v623, 1
      %v626 = vor.u32 %v621, %v625
      %v628 = vshll.u32 %v601, 16
      %v630 = vrot.slane %v628, 1
      %v631 = vsel %vm398, %v626, %v630
      %v633 = vshrl.u32 %v570, 16
      %v635 = vshll.u32 %v570, 16
      %v637 = vrot.slane %v635, 1
      %v638 = vor.u32 %v633, %v637
      %v640 = vshll.u32 %v602, 16
      %v642 = vrot.slane %v640, 1
      %v643 = vsel %vm398, %v638, %v642
      %v645 = vshrl.u32 %v571, 16
      %v647 = vshll.u32 %v571, 16
      %v649 = vrot.slane %v647, 1
      %v650 = vor.u32 %v645, %v649
      %v652 = vshll.u32 %v603, 16
      %v654 = vrot.slane %v652, 1
      %v655 = vsel %vm398, %v650, %v654
      %v657 = vshrl.u32 %v572, 16
      %v659 = vshll.u32 %v572, 16
      %v661 = vrot.slane %v659, 1
      %v662 = vor.u32 %v657, %v661
      %v664 = vshll.u32 %v604, 16
      %v666 = vrot.slane %v664, 1
      %v667 = vsel %vm398, %v662, %v666
      %v669 = vshrl.u32 %v573, 16
      %v671 = vshll.u32 %v573, 16
      %v673 = vrot.slane %v671, 1
      %v674 = vor.u32 %v669, %v673
      %v676 = vshll.u32 %v605, 16
      %v678 = vrot.slane %v676, 1
      %v679 = vsel %vm398, %v674, %v678
      %v681 = vshrl.u32 %v574, 16
      %v683 = vshll.u32 %v574, 16
      %v685 = vrot.slane %v683, 1
      %v686 = vor.u32 %v681, %v685
      %v688 = vshll.u32 %v606, 16
      %v690 = vrot.slane %v688, 1
      %v691 = vsel %vm398, %v686, %v690
      %v693 = vshrl.u32 %v575, 16
      %v695 = vshll.u32 %v575, 16
      %v697 = vrot.slane %v695, 1
      %v698 = vor.u32 %v693, %v697
      %v700 = vshll.u32 %v607, 16
      %v702 = vrot.slane %v700, 1
      %v703 = vsel %vm398, %v698, %v702
      %v712 = vrot.slane %v568, 1
      %v713 = vrot.slane %v600, 1
      %v714 = vsel %vm503, %v712, %v713
      %v715 = vrot.slane %v569, 1
      %v716 = vrot.slane %v601, 1
      %v717 = vsel %vm503, %v715, %v716
      %v718 = vrot.slane %v570, 1
      %v719 = vrot.slane %v602, 1
      %v720 = vsel %vm503, %v718, %v719
      %v721 = vrot.slane %v571, 1
      %v722 = vrot.slane %v603, 1
      %v723 = vsel %vm503, %v721, %v722
      %v724 = vrot.slane %v572, 1
      %v725 = vrot.slane %v604, 1
      %v726 = vsel %vm503, %v724, %v725
      %v727 = vrot.slane %v573, 1
      %v728 = vrot.slane %v605, 1
      %v729 = vsel %vm503, %v727, %v728
      %v730 = vrot.slane %v574, 1
      %v731 = vrot.slane %v606, 1
      %v732 = vsel %vm503, %v730, %v731
      %v733 = vrot.slane %v575, 1
      %v734 = vrot.slane %v607, 1
      %v735 = vsel %vm503, %v733, %v734
      %v760 = vunpack.c.l.b16 %v302
      %v761 = vunpack.c.l.b16 %v303
      %v762 = vunpack.c.l.b16 %v305
      %v763 = vunpack.c.l.b16 %v306
      %v764 = vunpack.c.l.b16 %v308
      %v765 = vunpack.c.l.b16 %v309
      %v766 = vunpack.c.l.b16 %v311
      %v767 = vunpack.c.l.b16 %v312
      %v768 = vunpack.c.l.b16 %v314
      %v769 = vunpack.c.l.b16 %v315
      %v770 = vunpack.c.l.b16 %v317
      %v771 = vunpack.c.l.b16 %v318
      %v772 = vunpack.c.l.b16 %v320
      %v773 = vunpack.c.l.b16 %v321
      %v774 = vunpack.c.l.b16 %v323
      %v775 = vunpack.c.l.b16 %v324
      %v776 = vpack.c.b16 %v761, %v760
      %v777 = vpack.c.b16 %v763, %v762
      %v778 = vpack.c.b16 %v765, %v764
      %v779 = vpack.c.b16 %v767, %v766
      %v780 = vpack.c.b16 %v769, %v768
      %v781 = vpack.c.b16 %v771, %v770
      %v782 = vpack.c.b16 %v773, %v772
      %v783 = vpack.c.b16 %v775, %v774
      %v800 = vunpack.c.l.b16 %v304
      %v801 = vunpack.c.l.b16 %v307
      %v802 = vunpack.c.l.b16 %v310
      %v803 = vunpack.c.l.b16 %v313
      %v804 = vunpack.c.l.b16 %v316
      %v805 = vunpack.c.l.b16 %v319
      %v806 = vunpack.c.l.b16 %v322
      %v807 = vunpack.c.l.b16 %v325
      %v808 = vpack.c.b16 %v800, %v800
      %v809 = vpack.c.b16 %v801, %v801
      %v810 = vpack.c.b16 %v802, %v802
      %v811 = vpack.c.b16 %v803, %v803
      %v812 = vpack.c.b16 %v804, %v804
      %v813 = vpack.c.b16 %v805, %v805
      %v814 = vpack.c.b16 %v806, %v806
      %v815 = vpack.c.b16 %v807, %v807
      %v817 = vshrl.u32 %v776, 16
      %v819 = vshll.u32 %v776, 16
      %v821 = vrot.slane %v819, 1
      %v822 = vor.u32 %v817, %v821
      %v824 = vshll.u32 %v808, 16
      %v826 = vrot.slane %v824, 1
      %v827 = vsel %vm398, %v822, %v826
      %v829 = vshrl.u32 %v777, 16
      %v831 = vshll.u32 %v777, 16
      %v833 = vrot.slane %v831, 1
      %v834 = vor.u32 %v829, %v833
      %v836 = vshll.u32 %v809, 16
      %v838 = vrot.slane %v836, 1
      %v839 = vsel %vm398, %v834, %v838
      %v841 = vshrl.u32 %v778, 16
      %v843 = vshll.u32 %v778, 16
      %v845 = vrot.slane %v843, 1
      %v846 = vor.u32 %v841, %v845
      %v848 = vshll.u32 %v810, 16
      %v850 = vrot.slane %v848, 1
      %v851 = vsel %vm398, %v846, %v850
      %v853 = vshrl.u32 %v779, 16
      %v855 = vshll.u32 %v779, 16
      %v857 = vrot.slane %v855, 1
      %v858 = vor.u32 %v853, %v857
      %v860 = vshll.u32 %v811, 16
      %v862 = vrot.slane %v860, 1
      %v863 = vsel %vm398, %v858, %v862
      %v865 = vshrl.u32 %v780, 16
      %v867 = vshll.u32 %v780, 16
      %v869 = vrot.slane %v867, 1
      %v870 = vor.u32 %v865, %v869
      %v872 = vshll.u32 %v812, 16
      %v874 = vrot.slane %v872, 1
      %v875 = vsel %vm398, %v870, %v874
      %v877 = vshrl.u32 %v781, 16
      %v879 = vshll.u32 %v781, 16
      %v881 = vrot.slane %v879, 1
      %v882 = vor.u32 %v877, %v881
      %v884 = vshll.u32 %v813, 16
      %v886 = vrot.slane %v884, 1
      %v887 = vsel %vm398, %v882, %v886
      %v889 = vshrl.u32 %v782, 16
      %v891 = vshll.u32 %v782, 16
      %v893 = vrot.slane %v891, 1
      %v894 = vor.u32 %v889, %v893
      %v896 = vshll.u32 %v814, 16
      %v898 = vrot.slane %v896, 1
      %v899 = vsel %vm398, %v894, %v898
      %v901 = vshrl.u32 %v783, 16
      %v903 = vshll.u32 %v783, 16
      %v905 = vrot.slane %v903, 1
      %v906 = vor.u32 %v901, %v905
      %v908 = vshll.u32 %v815, 16
      %v910 = vrot.slane %v908, 1
      %v911 = vsel %vm398, %v906, %v910
      %v920 = vrot.slane %v776, 1
      %v921 = vrot.slane %v808, 1
      %v922 = vsel %vm503, %v920, %v921
      %v923 = vrot.slane %v777, 1
      %v924 = vrot.slane %v809, 1
      %v925 = vsel %vm503, %v923, %v924
      %v926 = vrot.slane %v778, 1
      %v927 = vrot.slane %v810, 1
      %v928 = vsel %vm503, %v926, %v927
      %v929 = vrot.slane %v779, 1
      %v930 = vrot.slane %v811, 1
      %v931 = vsel %vm503, %v929, %v930
      %v932 = vrot.slane %v780, 1
      %v933 = vrot.slane %v812, 1
      %v934 = vsel %vm503, %v932, %v933
      %v935 = vrot.slane %v781, 1
      %v936 = vrot.slane %v813, 1
      %v937 = vsel %vm503, %v935, %v936
      %v938 = vrot.slane %v782, 1
      %v939 = vrot.slane %v814, 1
      %v940 = vsel %vm503, %v938, %v939
      %v941 = vrot.slane %v783, 1
      %v942 = vrot.slane %v815, 1
      %v943 = vsel %vm503, %v941, %v942
      %v952 = vld [vmem:[%s1] sm:$0xf]
      %v953 = vld [vmem:[%s1 + $0x4] sm:$0xf]
      %v954 = vld [vmem:[%s1 + $0x8] sm:$0xf]
      %v955 = vld [vmem:[%s1 + $0xc] sm:$0xf]
      %v956 = vld [vmem:[%s1 + $0x10] sm:$0xf]
      %v957 = vld [vmem:[%s1 + $0x14] sm:$0xf]
      %v958 = vld [vmem:[%s1 + $0x18] sm:$0xf]
      %v959 = vld [vmem:[%s1 + $0x1c] sm:$0xf]
      %v960 = vld [vmem:[%s1 + $0x20] sm:$0xf]
      %v961 = vld [vmem:[%s1 + $0x24] sm:$0xf]
      %v962 = vld [vmem:[%s1 + $0x28] sm:$0xf]
      %v963 = vld [vmem:[%s1 + $0x2c] sm:$0xf]
      %v964 = vld [vmem:[%s1 + $0x30] sm:$0xf]
      %v965 = vld [vmem:[%s1 + $0x34] sm:$0xf]
      %v966 = vld [vmem:[%s1 + $0x38] sm:$0xf]
      %v967 = vld [vmem:[%s1 + $0x3c] sm:$0xf]
      %v968 = vld [vmem:[%s1 + $0x40] sm:$0xf]
      %v969 = vld [vmem:[%s1 + $0x44] sm:$0xf]
      %v970 = vld [vmem:[%s1 + $0x48] sm:$0xf]
      %v971 = vld [vmem:[%s1 + $0x4c] sm:$0xf]
      %v972 = vld [vmem:[%s1 + $0x50] sm:$0xf]
      %v973 = vld [vmem:[%s1 + $0x54] sm:$0xf]
      %v974 = vld [vmem:[%s1 + $0x58] sm:$0xf]
      %v975 = vld [vmem:[%s1 + $0x5c] sm:$0xf]
      %v976 = vld [vmem:[%s1 + $0x60] sm:$0xf]
      %v977 = vld [vmem:[%s1 + $0x64] sm:$0xf]
      %v978 = vld [vmem:[%s1 + $0x68] sm:$0xf]
      %v979 = vld [vmem:[%s1 + $0x6c] sm:$0xf]
      %v980 = vld [vmem:[%s1 + $0x70] sm:$0xf]
      %v981 = vld [vmem:[%s1 + $0x74] sm:$0xf]
      %v982 = vld [vmem:[%s1 + $0x78] sm:$0xf]
      %v983 = vld [vmem:[%s1 + $0x7c] sm:$0xf]
      %v984 = vld [vmem:[%s1 + $0x80] sm:$0xf]
      %v985 = vld [vmem:[%s1 + $0x84] sm:$0xf]
      %v986 = vld [vmem:[%s1 + $0x88] sm:$0xf]
      %v987 = vld [vmem:[%s1 + $0x8c] sm:$0xf]
      %v988 = vld [vmem:[%s1 + $0x90] sm:$0xf]
      %v989 = vld [vmem:[%s1 + $0x94] sm:$0xf]
      %v990 = vld [vmem:[%s1 + $0x98] sm:$0xf]
      %v991 = vld [vmem:[%s1 + $0x9c] sm:$0xf]
      %v992 = vld [vmem:[%s1 + $0xa0] sm:$0xf]
      %v993 = vld [vmem:[%s1 + $0xa4] sm:$0xf]
      %v994 = vld [vmem:[%s1 + $0xa8] sm:$0xf]
      %v995 = vld [vmem:[%s1 + $0xac] sm:$0xf]
      %v996 = vld [vmem:[%s1 + $0xb0] sm:$0xf]
      %v997 = vld [vmem:[%s1 + $0xb4] sm:$0xf]
      %v998 = vld [vmem:[%s1 + $0xb8] sm:$0xf]
      %v999 = vld [vmem:[%s1 + $0xbc] sm:$0xf]
      %v1000 = vld [vmem:[%s1 + $0xc0] sm:$0xf]
      %v1001 = vld [vmem:[%s1 + $0xc4] sm:$0xf]
      %v1002 = vld [vmem:[%s1 + $0xc8] sm:$0xf]
      %v1003 = vld [vmem:[%s1 + $0xcc] sm:$0xf]
      %v1004 = vld [vmem:[%s1 + $0xd0] sm:$0xf]
      %v1005 = vld [vmem:[%s1 + $0xd4] sm:$0xf]
      %v1006 = vld [vmem:[%s1 + $0xd8] sm:$0xf]
      %v1007 = vld [vmem:[%s1 + $0xdc] sm:$0xf]
      %v1008 = vld [vmem:[%s1 + $0xe0] sm:$0xf]
      %v1009 = vld [vmem:[%s1 + $0xe4] sm:$0xf]
      %v1010 = vld [vmem:[%s1 + $0xe8] sm:$0xf]
      %v1011 = vld [vmem:[%s1 + $0xec] sm:$0xf]
      %v1012 = vld [vmem:[%s1 + $0xf0] sm:$0xf]
      %v1013 = vld [vmem:[%s1 + $0xf4] sm:$0xf]
      %v1014 = vld [vmem:[%s1 + $0xf8] sm:$0xf]
      %v1015 = vld [vmem:[%s1 + $0xfc] sm:$0xf]
      %v1016 = vld [vmem:[%s1 + $0x100] sm:$0xf]
      %v1017 = vld [vmem:[%s1 + $0x104] sm:$0xf]
      %v1018 = vld [vmem:[%s1 + $0x108] sm:$0xf]
      %v1019 = vld [vmem:[%s1 + $0x10c] sm:$0xf]
      %v1020 = vld [vmem:[%s1 + $0x110] sm:$0xf]
      %v1021 = vld [vmem:[%s1 + $0x114] sm:$0xf]
      %v1022 = vld [vmem:[%s1 + $0x118] sm:$0xf]
      %v1023 = vld [vmem:[%s1 + $0x11c] sm:$0xf]
      %v1024 = vld [vmem:[%s1 + $0x120] sm:$0xf]
      %v1025 = vld [vmem:[%s1 + $0x124] sm:$0xf]
      %v1026 = vld [vmem:[%s1 + $0x128] sm:$0xf]
      %v1027 = vld [vmem:[%s1 + $0x12c] sm:$0xf]
      %v1028 = vld [vmem:[%s1 + $0x130] sm:$0xf]
      %v1029 = vld [vmem:[%s1 + $0x134] sm:$0xf]
      %v1030 = vld [vmem:[%s1 + $0x138] sm:$0xf]
      %v1031 = vld [vmem:[%s1 + $0x13c] sm:$0xf]
      %v1032 = vld [vmem:[%s1 + $0x140] sm:$0xf]
      %v1033 = vld [vmem:[%s1 + $0x144] sm:$0xf]
      %v1034 = vld [vmem:[%s1 + $0x148] sm:$0xf]
      %v1035 = vld [vmem:[%s1 + $0x14c] sm:$0xf]
      %v1036 = vld [vmem:[%s1 + $0x150] sm:$0xf]
      %v1037 = vld [vmem:[%s1 + $0x154] sm:$0xf]
      %v1038 = vld [vmem:[%s1 + $0x158] sm:$0xf]
      %v1039 = vld [vmem:[%s1 + $0x15c] sm:$0xf]
      %v1040 = vld [vmem:[%s1 + $0x160] sm:$0xf]
      %v1041 = vld [vmem:[%s1 + $0x164] sm:$0xf]
      %v1042 = vld [vmem:[%s1 + $0x168] sm:$0xf]
      %v1043 = vld [vmem:[%s1 + $0x16c] sm:$0xf]
      %v1044 = vld [vmem:[%s1 + $0x170] sm:$0xf]
      %v1045 = vld [vmem:[%s1 + $0x174] sm:$0xf]
      %v1046 = vld [vmem:[%s1 + $0x178] sm:$0xf]
      %v1047 = vld [vmem:[%s1 + $0x17c] sm:$0xf]
      %v1048 = vld [vmem:[%s1 + $0x180] sm:$0xf]
      %v1049 = vld [vmem:[%s1 + $0x184] sm:$0xf]
      %v1050 = vld [vmem:[%s1 + $0x188] sm:$0xf]
      %v1051 = vld [vmem:[%s1 + $0x18c] sm:$0xf]
      %v1052 = vld [vmem:[%s1 + $0x190] sm:$0xf]
      %v1053 = vld [vmem:[%s1 + $0x194] sm:$0xf]
      %v1054 = vld [vmem:[%s1 + $0x198] sm:$0xf]
      %v1055 = vld [vmem:[%s1 + $0x19c] sm:$0xf]
      %v1056 = vld [vmem:[%s1 + $0x1a0] sm:$0xf]
      %v1057 = vld [vmem:[%s1 + $0x1a4] sm:$0xf]
      %v1058 = vld [vmem:[%s1 + $0x1a8] sm:$0xf]
      %v1059 = vld [vmem:[%s1 + $0x1ac] sm:$0xf]
      %v1060 = vld [vmem:[%s1 + $0x1b0] sm:$0xf]
      %v1061 = vld [vmem:[%s1 + $0x1b4] sm:$0xf]
      %v1062 = vld [vmem:[%s1 + $0x1b8] sm:$0xf]
      %v1063 = vld [vmem:[%s1 + $0x1bc] sm:$0xf]
      %v1064 = vld [vmem:[%s1 + $0x1c0] sm:$0xf]
      %v1065 = vld [vmem:[%s1 + $0x1c4] sm:$0xf]
      %v1066 = vld [vmem:[%s1 + $0x1c8] sm:$0xf]
      %v1067 = vld [vmem:[%s1 + $0x1cc] sm:$0xf]
      %v1068 = vld [vmem:[%s1 + $0x1d0] sm:$0xf]
      %v1069 = vld [vmem:[%s1 + $0x1d4] sm:$0xf]
      %v1070 = vld [vmem:[%s1 + $0x1d8] sm:$0xf]
      %v1071 = vld [vmem:[%s1 + $0x1dc] sm:$0xf]
      %v1072 = vld [vmem:[%s1 + $0x1e0] sm:$0xf]
      %v1073 = vld [vmem:[%s1 + $0x1e4] sm:$0xf]
      %v1074 = vld [vmem:[%s1 + $0x1e8] sm:$0xf]
      %v1075 = vld [vmem:[%s1 + $0x1ec] sm:$0xf]
      %v1076 = vld [vmem:[%s1 + $0x1f0] sm:$0xf]
      %v1077 = vld [vmem:[%s1 + $0x1f4] sm:$0xf]
      %v1078 = vld [vmem:[%s1 + $0x1f8] sm:$0xf]
      %v1079 = vld [vmem:[%s1 + $0x1fc] sm:$0xf]
      %v1080 = vld [vmem:[%s1 + $0x200] sm:$0xf]
      %v1081 = vld [vmem:[%s1 + $0x204] sm:$0xf]
      %v1082 = vld [vmem:[%s1 + $0x208] sm:$0xf]
      %v1083 = vld [vmem:[%s1 + $0x20c] sm:$0xf]
      %v1084 = vld [vmem:[%s1 + $0x210] sm:$0xf]
      %v1085 = vld [vmem:[%s1 + $0x214] sm:$0xf]
      %v1086 = vld [vmem:[%s1 + $0x218] sm:$0xf]
      %v1087 = vld [vmem:[%s1 + $0x21c] sm:$0xf]
      %v1088 = vld [vmem:[%s1 + $0x220] sm:$0xf]
      %v1089 = vld [vmem:[%s1 + $0x224] sm:$0xf]
      %v1090 = vld [vmem:[%s1 + $0x228] sm:$0xf]
      %v1091 = vld [vmem:[%s1 + $0x22c] sm:$0xf]
      %v1092 = vld [vmem:[%s1 + $0x230] sm:$0xf]
      %v1093 = vld [vmem:[%s1 + $0x234] sm:$0xf]
      %v1094 = vld [vmem:[%s1 + $0x238] sm:$0xf]
      %v1095 = vld [vmem:[%s1 + $0x23c] sm:$0xf]
      %v1240 = vunpack.c.l.b16 %v952
      %v1241 = vunpack.c.l.b16 %v953
      %v1242 = vunpack.c.l.b16 %v954
      %v1243 = vunpack.c.l.b16 %v955
      %v1244 = vunpack.c.l.b16 %v956
      %v1245 = vunpack.c.l.b16 %v957
      %v1246 = vunpack.c.l.b16 %v958
      %v1247 = vunpack.c.l.b16 %v959
      %v1248 = vunpack.c.l.b16 %v960
      %v1249 = vunpack.c.l.b16 %v961
      %v1250 = vunpack.c.l.b16 %v962
      %v1251 = vunpack.c.l.b16 %v963
      %v1252 = vunpack.c.l.b16 %v964
      %v1253 = vunpack.c.l.b16 %v965
      %v1254 = vunpack.c.l.b16 %v966
      %v1255 = vunpack.c.l.b16 %v967
      %v1256 = vunpack.c.l.b16 %v968
      %v1257 = vunpack.c.l.b16 %v969
      %v1258 = vunpack.c.l.b16 %v970
      %v1259 = vunpack.c.l.b16 %v971
      %v1260 = vunpack.c.l.b16 %v972
      %v1261 = vunpack.c.l.b16 %v973
      %v1262 = vunpack.c.l.b16 %v974
      %v1263 = vunpack.c.l.b16 %v975
      %v1264 = vunpack.c.l.b16 %v976
      %v1265 = vunpack.c.l.b16 %v977
      %v1266 = vunpack.c.l.b16 %v978
      %v1267 = vunpack.c.l.b16 %v979
      %v1268 = vunpack.c.l.b16 %v980
      %v1269 = vunpack.c.l.b16 %v981
      %v1270 = vunpack.c.l.b16 %v982
      %v1271 = vunpack.c.l.b16 %v983
      %v1272 = vunpack.c.l.b16 %v984
      %v1273 = vunpack.c.l.b16 %v985
      %v1274 = vunpack.c.l.b16 %v986
      %v1275 = vunpack.c.l.b16 %v987
      %v1276 = vunpack.c.l.b16 %v988
      %v1277 = vunpack.c.l.b16 %v989
      %v1278 = vunpack.c.l.b16 %v990
      %v1279 = vunpack.c.l.b16 %v991
      %v1280 = vunpack.c.l.b16 %v992
      %v1281 = vunpack.c.l.b16 %v993
      %v1282 = vunpack.c.l.b16 %v994
      %v1283 = vunpack.c.l.b16 %v995
      %v1284 = vunpack.c.l.b16 %v996
      %v1285 = vunpack.c.l.b16 %v997
      %v1286 = vunpack.c.l.b16 %v998
      %v1287 = vunpack.c.l.b16 %v999
      %v1288 = vunpack.c.l.b16 %v1000
      %v1289 = vunpack.c.l.b16 %v1001
      %v1290 = vunpack.c.l.b16 %v1002
      %v1291 = vunpack.c.l.b16 %v1003
      %v1292 = vunpack.c.l.b16 %v1004
      %v1293 = vunpack.c.l.b16 %v1005
      %v1294 = vunpack.c.l.b16 %v1006
      %v1295 = vunpack.c.l.b16 %v1007
      %v1296 = vunpack.c.l.b16 %v1008
      %v1297 = vunpack.c.l.b16 %v1009
      %v1298 = vunpack.c.l.b16 %v1010
      %v1299 = vunpack.c.l.b16 %v1011
      %v1300 = vunpack.c.l.b16 %v1012
      %v1301 = vunpack.c.l.b16 %v1013
      %v1302 = vunpack.c.l.b16 %v1014
      %v1303 = vunpack.c.l.b16 %v1015
      %v1304 = vunpack.c.l.b16 %v1016
      %v1305 = vunpack.c.l.b16 %v1017
      %v1306 = vunpack.c.l.b16 %v1018
      %v1307 = vunpack.c.l.b16 %v1019
      %v1308 = vunpack.c.l.b16 %v1020
      %v1309 = vunpack.c.l.b16 %v1021
      %v1310 = vunpack.c.l.b16 %v1022
      %v1311 = vunpack.c.l.b16 %v1023
      %v1312 = vunpack.c.l.b16 %v1024
      %v1313 = vunpack.c.l.b16 %v1025
      %v1314 = vunpack.c.l.b16 %v1026
      %v1315 = vunpack.c.l.b16 %v1027
      %v1316 = vunpack.c.l.b16 %v1028
      %v1317 = vunpack.c.l.b16 %v1029
      %v1318 = vunpack.c.l.b16 %v1030
      %v1319 = vunpack.c.l.b16 %v1031
      %v1320 = vunpack.c.l.b16 %v1032
      %v1321 = vunpack.c.l.b16 %v1033
      %v1322 = vunpack.c.l.b16 %v1034
      %v1323 = vunpack.c.l.b16 %v1035
      %v1324 = vunpack.c.l.b16 %v1036
      %v1325 = vunpack.c.l.b16 %v1037
      %v1326 = vunpack.c.l.b16 %v1038
      %v1327 = vunpack.c.l.b16 %v1039
      %v1328 = vunpack.c.l.b16 %v1040
      %v1329 = vunpack.c.l.b16 %v1041
      %v1330 = vunpack.c.l.b16 %v1042
      %v1331 = vunpack.c.l.b16 %v1043
      %v1332 = vunpack.c.l.b16 %v1044
      %v1333 = vunpack.c.l.b16 %v1045
      %v1334 = vunpack.c.l.b16 %v1046
      %v1335 = vunpack.c.l.b16 %v1047
      %v1336 = vunpack.c.l.b16 %v1048
      %v1337 = vunpack.c.l.b16 %v1049
      %v1338 = vunpack.c.l.b16 %v1050
      %v1339 = vunpack.c.l.b16 %v1051
      %v1340 = vunpack.c.l.b16 %v1052
      %v1341 = vunpack.c.l.b16 %v1053
      %v1342 = vunpack.c.l.b16 %v1054
      %v1343 = vunpack.c.l.b16 %v1055
      %v1344 = vunpack.c.l.b16 %v1056
      %v1345 = vunpack.c.l.b16 %v1057
      %v1346 = vunpack.c.l.b16 %v1058
      %v1347 = vunpack.c.l.b16 %v1059
      %v1348 = vunpack.c.l.b16 %v1060
      %v1349 = vunpack.c.l.b16 %v1061
      %v1350 = vunpack.c.l.b16 %v1062
      %v1351 = vunpack.c.l.b16 %v1063
      %v1352 = vunpack.c.l.b16 %v1064
      %v1353 = vunpack.c.l.b16 %v1065
      %v1354 = vunpack.c.l.b16 %v1066
      %v1355 = vunpack.c.l.b16 %v1067
      %v1356 = vunpack.c.l.b16 %v1068
      %v1357 = vunpack.c.l.b16 %v1069
      %v1358 = vunpack.c.l.b16 %v1070
      %v1359 = vunpack.c.l.b16 %v1071
      %v1360 = vunpack.c.l.b16 %v1072
      %v1361 = vunpack.c.l.b16 %v1073
      %v1362 = vunpack.c.l.b16 %v1074
      %v1363 = vunpack.c.l.b16 %v1075
      %v1364 = vunpack.c.l.b16 %v1076
      %v1365 = vunpack.c.l.b16 %v1077
      %v1366 = vunpack.c.l.b16 %v1078
      %v1367 = vunpack.c.l.b16 %v1079
      %v1368 = vunpack.c.l.b16 %v1080
      %v1369 = vunpack.c.l.b16 %v1081
      %v1370 = vunpack.c.l.b16 %v1082
      %v1371 = vunpack.c.l.b16 %v1083
      %v1372 = vunpack.c.l.b16 %v1084
      %v1373 = vunpack.c.l.b16 %v1085
      %v1374 = vunpack.c.l.b16 %v1086
      %v1375 = vunpack.c.l.b16 %v1087
      %v1376 = vunpack.c.l.b16 %v1088
      %v1377 = vunpack.c.l.b16 %v1089
      %v1378 = vunpack.c.l.b16 %v1090
      %v1379 = vunpack.c.l.b16 %v1091
      %v1380 = vunpack.c.l.b16 %v1092
      %v1381 = vunpack.c.l.b16 %v1093
      %v1382 = vunpack.c.l.b16 %v1094
      %v1383 = vunpack.c.l.b16 %v1095
      %v1384 = vpack.c.b16 %v1241, %v1240
      %v1385 = vpack.c.b16 %v1243, %v1242
      %v1386 = vpack.c.b16 %v1245, %v1244
      %v1387 = vpack.c.b16 %v1247, %v1246
      %v1388 = vpack.c.b16 %v1249, %v1248
      %v1389 = vpack.c.b16 %v1251, %v1250
      %v1390 = vpack.c.b16 %v1253, %v1252
      %v1391 = vpack.c.b16 %v1255, %v1254
      %v1392 = vpack.c.b16 %v1257, %v1256
      %v1393 = vpack.c.b16 %v1259, %v1258
      %v1394 = vpack.c.b16 %v1261, %v1260
      %v1395 = vpack.c.b16 %v1263, %v1262
      %v1396 = vpack.c.b16 %v1265, %v1264
      %v1397 = vpack.c.b16 %v1267, %v1266
      %v1398 = vpack.c.b16 %v1269, %v1268
      %v1399 = vpack.c.b16 %v1271, %v1270
      %v1400 = vpack.c.b16 %v1273, %v1272
      %v1401 = vpack.c.b16 %v1275, %v1274
      %v1402 = vpack.c.b16 %v1277, %v1276
      %v1403 = vpack.c.b16 %v1279, %v1278
      %v1404 = vpack.c.b16 %v1281, %v1280
      %v1405 = vpack.c.b16 %v1283, %v1282
      %v1406 = vpack.c.b16 %v1285, %v1284
      %v1407 = vpack.c.b16 %v1287, %v1286
      %v1408 = vpack.c.b16 %v1289, %v1288
      %v1409 = vpack.c.b16 %v1291, %v1290
      %v1410 = vpack.c.b16 %v1293, %v1292
      %v1411 = vpack.c.b16 %v1295, %v1294
      %v1412 = vpack.c.b16 %v1297, %v1296
      %v1413 = vpack.c.b16 %v1299, %v1298
      %v1414 = vpack.c.b16 %v1301, %v1300
      %v1415 = vpack.c.b16 %v1303, %v1302
      %v1416 = vpack.c.b16 %v1305, %v1304
      %v1417 = vpack.c.b16 %v1307, %v1306
      %v1418 = vpack.c.b16 %v1309, %v1308
      %v1419 = vpack.c.b16 %v1311, %v1310
      %v1420 = vpack.c.b16 %v1313, %v1312
      %v1421 = vpack.c.b16 %v1315, %v1314
      %v1422 = vpack.c.b16 %v1317, %v1316
      %v1423 = vpack.c.b16 %v1319, %v1318
      %v1424 = vpack.c.b16 %v1321, %v1320
      %v1425 = vpack.c.b16 %v1323, %v1322
      %v1426 = vpack.c.b16 %v1325, %v1324
      %v1427 = vpack.c.b16 %v1327, %v1326
      %v1428 = vpack.c.b16 %v1329, %v1328
      %v1429 = vpack.c.b16 %v1331, %v1330
      %v1430 = vpack.c.b16 %v1333, %v1332
      %v1431 = vpack.c.b16 %v1335, %v1334
      %v1432 = vpack.c.b16 %v1337, %v1336
      %v1433 = vpack.c.b16 %v1339, %v1338
      %v1434 = vpack.c.b16 %v1341, %v1340
      %v1435 = vpack.c.b16 %v1343, %v1342
      %v1436 = vpack.c.b16 %v1345, %v1344
      %v1437 = vpack.c.b16 %v1347, %v1346
      %v1438 = vpack.c.b16 %v1349, %v1348
      %v1439 = vpack.c.b16 %v1351, %v1350
      %v1440 = vpack.c.b16 %v1353, %v1352
      %v1441 = vpack.c.b16 %v1355, %v1354
      %v1442 = vpack.c.b16 %v1357, %v1356
      %v1443 = vpack.c.b16 %v1359, %v1358
      %v1444 = vpack.c.b16 %v1361, %v1360
      %v1445 = vpack.c.b16 %v1363, %v1362
      %v1446 = vpack.c.b16 %v1365, %v1364
      %v1447 = vpack.c.b16 %v1367, %v1366
      %v1448 = vpack.c.b16 %v1369, %v1368
      %v1449 = vpack.c.b16 %v1371, %v1370
      %v1450 = vpack.c.b16 %v1373, %v1372
      %v1451 = vpack.c.b16 %v1375, %v1374
      %v1452 = vpack.c.b16 %v1377, %v1376
      %v1453 = vpack.c.b16 %v1379, %v1378
      %v1454 = vpack.c.b16 %v1381, %v1380
      %v1455 = vpack.c.b16 %v1383, %v1382
      %1528 = vmatpush.bf16.msra.mxu0 %v1391
      %1529 = vmatpush.bf16.msra.mxu0 %v1390
      %1530 = vmatpush.bf16.msra.mxu0 %v1389
      %1531 = vmatpush.bf16.msra.mxu0 %v1388
      %1532 = vmatpush.bf16.msra.mxu0 %v1387
      %1533 = vmatpush.bf16.msra.mxu0 %v1386
      %1534 = vmatpush.bf16.msra.mxu0 %v1385
      %1535 = vmatpush.bf16.msra.mxu0 %v1384
      %1536 = vmatmul.bf16.gmra.mxu0 %v358
      %v1537 = vpop.f32.mrf.mxu0
      %v1538 = vadd.f32 0.0, %v1537
      %v1539 = vpop.f32.mrf.mxu0
      %v1540 = vadd.f32 0.0, %v1539
      %1541 = vmatmul.bf16.gmra.mxu0 %v359
      %v1542 = vpop.f32.mrf.mxu0
      %v1543 = vadd.f32 0.0, %v1542
      %v1544 = vpop.f32.mrf.mxu0
      %v1545 = vadd.f32 0.0, %v1544
      %1546 = vmatmul.bf16.gmra.mxu0 %v360
      %v1547 = vpop.f32.mrf.mxu0
      %v1548 = vadd.f32 0.0, %v1547
      %v1549 = vpop.f32.mrf.mxu0
      %v1550 = vadd.f32 0.0, %v1549
      %1551 = vmatmul.bf16.gmra.mxu0 %v361
      %v1552 = vpop.f32.mrf.mxu0
      %v1553 = vadd.f32 0.0, %v1552
      %v1554 = vpop.f32.mrf.mxu0
      %v1555 = vadd.f32 0.0, %v1554
      %1556 = vmatmul.bf16.gmra.mxu0 %v362
      %v1557 = vpop.f32.mrf.mxu0
      %v1558 = vadd.f32 0.0, %v1557
      %v1559 = vpop.f32.mrf.mxu0
      %v1560 = vadd.f32 0.0, %v1559
      %1561 = vmatmul.bf16.gmra.mxu0 %v363
      %v1562 = vpop.f32.mrf.mxu0
      %v1563 = vadd.f32 0.0, %v1562
      %v1564 = vpop.f32.mrf.mxu0
      %v1565 = vadd.f32 0.0, %v1564
      %1566 = vmatmul.bf16.gmra.mxu0 %v364
      %v1567 = vpop.f32.mrf.mxu0
      %v1568 = vadd.f32 0.0, %v1567
      %v1569 = vpop.f32.mrf.mxu0
      %v1570 = vadd.f32 0.0, %v1569
      %1571 = vmatmul.bf16.gmra.mxu0 %v365
      %v1572 = vpop.f32.mrf.mxu0
      %v1573 = vadd.f32 0.0, %v1572
      %v1574 = vpop.f32.mrf.mxu0
      %v1575 = vadd.f32 0.0, %v1574
      %1576 = vdwg.mxu0
      %1577 = vmatpush.bf16.msra.mxu0 %v1399
      %1578 = vmatpush.bf16.msra.mxu0 %v1398
      %1579 = vmatpush.bf16.msra.mxu0 %v1397
      %1580 = vmatpush.bf16.msra.mxu0 %v1396
      %1581 = vmatpush.bf16.msra.mxu0 %v1395
      %1582 = vmatpush.bf16.msra.mxu0 %v1394
      %1583 = vmatpush.bf16.msra.mxu0 %v1393
      %1584 = vmatpush.bf16.msra.mxu0 %v1392
      %1585 = vmatmul.bf16.gmra.mxu0 %v410
      %v1586 = vpop.f32.mrf.mxu0
      %v1587 = vadd.f32 %v1538, %v1586
      %v1588 = vpop.f32.mrf.mxu0
      %v1589 = vadd.f32 %v1540, %v1588
      %1590 = vmatmul.bf16.gmra.mxu0 %v422
      %v1591 = vpop.f32.mrf.mxu0
      %v1592 = vadd.f32 %v1543, %v1591
      %v1593 = vpop.f32.mrf.mxu0
      %v1594 = vadd.f32 %v1545, %v1593
      %1595 = vmatmul.bf16.gmra.mxu0 %v434
      %v1596 = vpop.f32.mrf.mxu0
      %v1597 = vadd.f32 %v1548, %v1596
      %v1598 = vpop.f32.mrf.mxu0
      %v1599 = vadd.f32 %v1550, %v1598
      %1600 = vmatmul.bf16.gmra.mxu0 %v446
      %v1601 = vpop.f32.mrf.mxu0
      %v1602 = vadd.f32 %v1553, %v1601
      %v1603 = vpop.f32.mrf.mxu0
      %v1604 = vadd.f32 %v1555, %v1603
      %1605 = vmatmul.bf16.gmra.mxu0 %v458
      %v1606 = vpop.f32.mrf.mxu0
      %v1607 = vadd.f32 %v1558, %v1606
      %v1608 = vpop.f32.mrf.mxu0
      %v1609 = vadd.f32 %v1560, %v1608
      %1610 = vmatmul.bf16.gmra.mxu0 %v470
      %v1611 = vpop.f32.mrf.mxu0
      %v1612 = vadd.f32 %v1563, %v1611
      %v1613 = vpop.f32.mrf.mxu0
      %v1614 = vadd.f32 %v1565, %v1613
      %1615 = vmatmul.bf16.gmra.mxu0 %v482
      %v1616 = vpop.f32.mrf.mxu0
      %v1617 = vadd.f32 %v1568, %v1616
      %v1618 = vpop.f32.mrf.mxu0
      %v1619 = vadd.f32 %v1570, %v1618
      %1620 = vmatmul.bf16.gmra.mxu0 %v494
      %v1621 = vpop.f32.mrf.mxu0
      %v1622 = vadd.f32 %v1573, %v1621
      %v1623 = vpop.f32.mrf.mxu0
      %v1624 = vadd.f32 %v1575, %v1623
      %1625 = vdwg.mxu0
      %1626 = vmatpush.bf16.msra.mxu0 %v1407
      %1627 = vmatpush.bf16.msra.mxu0 %v1406
      %1628 = vmatpush.bf16.msra.mxu0 %v1405
      %1629 = vmatpush.bf16.msra.mxu0 %v1404
      %1630 = vmatpush.bf16.msra.mxu0 %v1403
      %1631 = vmatpush.bf16.msra.mxu0 %v1402
      %1632 = vmatpush.bf16.msra.mxu0 %v1401
      %1633 = vmatpush.bf16.msra.mxu0 %v1400
      %1634 = vmatmul.bf16.gmra.mxu0 %v506
      %v1635 = vpop.f32.mrf.mxu0
      %v1636 = vadd.f32 %v1587, %v1635
      %v1637 = vpop.f32.mrf.mxu0
      %v1638 = vadd.f32 %v1589, %v1637
      %1639 = vmatmul.bf16.gmra.mxu0 %v509
      %v1640 = vpop.f32.mrf.mxu0
      %v1641 = vadd.f32 %v1592, %v1640
      %v1642 = vpop.f32.mrf.mxu0
      %v1643 = vadd.f32 %v1594, %v1642
      %1644 = vmatmul.bf16.gmra.mxu0 %v512
      %v1645 = vpop.f32.mrf.mxu0
      %v1646 = vadd.f32 %v1597, %v1645
      %v1647 = vpop.f32.mrf.mxu0
      %v1648 = vadd.f32 %v1599, %v1647
      %1649 = vmatmul.bf16.gmra.mxu0 %v515
      %v1650 = vpop.f32.mrf.mxu0
      %v1651 = vadd.f32 %v1602, %v1650
      %v1652 = vpop.f32.mrf.mxu0
      %v1653 = vadd.f32 %v1604, %v1652
      %1654 = vmatmul.bf16.gmra.mxu0 %v518
      %v1655 = vpop.f32.mrf.mxu0
      %v1656 = vadd.f32 %v1607, %v1655
      %v1657 = vpop.f32.mrf.mxu0
      %v1658 = vadd.f32 %v1609, %v1657
      %1659 = vmatmul.bf16.gmra.mxu0 %v521
      %v1660 = vpop.f32.mrf.mxu0
      %v1661 = vadd.f32 %v1612, %v1660
      %v1662 = vpop.f32.mrf.mxu0
      %v1663 = vadd.f32 %v1614, %v1662
      %1664 = vmatmul.bf16.gmra.mxu0 %v524
      %v1665 = vpop.f32.mrf.mxu0
      %v1666 = vadd.f32 %v1617, %v1665
      %v1667 = vpop.f32.mrf.mxu0
      %v1668 = vadd.f32 %v1619, %v1667
      %1669 = vmatmul.bf16.gmra.mxu0 %v527
      %v1670 = vpop.f32.mrf.mxu0
      %v1671 = vadd.f32 %v1622, %v1670
      %v1672 = vpop.f32.mrf.mxu0
      %v1673 = vadd.f32 %v1624, %v1672
      %1674 = vdwg.mxu0
      %1675 = vmatpush.bf16.msra.mxu0 %v1415
      %1676 = vmatpush.bf16.msra.mxu0 %v1414
      %1677 = vmatpush.bf16.msra.mxu0 %v1413
      %1678 = vmatpush.bf16.msra.mxu0 %v1412
      %1679 = vmatpush.bf16.msra.mxu0 %v1411
      %1680 = vmatpush.bf16.msra.mxu0 %v1410
      %1681 = vmatpush.bf16.msra.mxu0 %v1409
      %1682 = vmatpush.bf16.msra.mxu0 %v1408
      %1683 = vmatmul.bf16.gmra.mxu0 %v568
      %v1684 = vpop.f32.mrf.mxu0
      %v1685 = vadd.f32 %v1636, %v1684
      %v1686 = vpop.f32.mrf.mxu0
      %v1687 = vadd.f32 %v1638, %v1686
      %1688 = vmatmul.bf16.gmra.mxu0 %v569
      %v1689 = vpop.f32.mrf.mxu0
      %v1690 = vadd.f32 %v1641, %v1689
      %v1691 = vpop.f32.mrf.mxu0
      %v1692 = vadd.f32 %v1643, %v1691
      %1693 = vmatmul.bf16.gmra.mxu0 %v570
      %v1694 = vpop.f32.mrf.mxu0
      %v1695 = vadd.f32 %v1646, %v1694
      %v1696 = vpop.f32.mrf.mxu0
      %v1697 = vadd.f32 %v1648, %v1696
      %1698 = vmatmul.bf16.gmra.mxu0 %v571
      %v1699 = vpop.f32.mrf.mxu0
      %v1700 = vadd.f32 %v1651, %v1699
      %v1701 = vpop.f32.mrf.mxu0
      %v1702 = vadd.f32 %v1653, %v1701
      %1703 = vmatmul.bf16.gmra.mxu0 %v572
      %v1704 = vpop.f32.mrf.mxu0
      %v1705 = vadd.f32 %v1656, %v1704
      %v1706 = vpop.f32.mrf.mxu0
      %v1707 = vadd.f32 %v1658, %v1706
      %1708 = vmatmul.bf16.gmra.mxu0 %v573
      %v1709 = vpop.f32.mrf.mxu0
      %v1710 = vadd.f32 %v1661, %v1709
      %v1711 = vpop.f32.mrf.mxu0
      %v1712 = vadd.f32 %v1663, %v1711
      %1713 = vmatmul.bf16.gmra.mxu0 %v574
      %v1714 = vpop.f32.mrf.mxu0
      %v1715 = vadd.f32 %v1666, %v1714
      %v1716 = vpop.f32.mrf.mxu0
      %v1717 = vadd.f32 %v1668, %v1716
      %1718 = vmatmul.bf16.gmra.mxu0 %v575
      %v1719 = vpop.f32.mrf.mxu0
      %v1720 = vadd.f32 %v1671, %v1719
      %v1721 = vpop.f32.mrf.mxu0
      %v1722 = vadd.f32 %v1673, %v1721
      %1723 = vdwg.mxu0
      %1724 = vmatpush.bf16.msra.mxu0 %v1423
      %1725 = vmatpush.bf16.msra.mxu0 %v1422
      %1726 = vmatpush.bf16.msra.mxu0 %v1421
      %1727 = vmatpush.bf16.msra.mxu0 %v1420
      %1728 = vmatpush.bf16.msra.mxu0 %v1419
      %1729 = vmatpush.bf16.msra.mxu0 %v1418
      %1730 = vmatpush.bf16.msra.mxu0 %v1417
      %1731 = vmatpush.bf16.msra.mxu0 %v1416
      %1732 = vmatmul.bf16.gmra.mxu0 %v619
      %v1733 = vpop.f32.mrf.mxu0
      %v1734 = vadd.f32 %v1685, %v1733
      %v1735 = vpop.f32.mrf.mxu0
      %v1736 = vadd.f32 %v1687, %v1735
      %1737 = vmatmul.bf16.gmra.mxu0 %v631
      %v1738 = vpop.f32.mrf.mxu0
      %v1739 = vadd.f32 %v1690, %v1738
      %v1740 = vpop.f32.mrf.mxu0
      %v1741 = vadd.f32 %v1692, %v1740
      %1742 = vmatmul.bf16.gmra.mxu0 %v643
      %v1743 = vpop.f32.mrf.mxu0
      %v1744 = vadd.f32 %v1695, %v1743
      %v1745 = vpop.f32.mrf.mxu0
      %v1746 = vadd.f32 %v1697, %v1745
      %1747 = vmatmul.bf16.gmra.mxu0 %v655
      %v1748 = vpop.f32.mrf.mxu0
      %v1749 = vadd.f32 %v1700, %v1748
      %v1750 = vpop.f32.mrf.mxu0
      %v1751 = vadd.f32 %v1702, %v1750
      %1752 = vmatmul.bf16.gmra.mxu0 %v667
      %v1753 = vpop.f32.mrf.mxu0
      %v1754 = vadd.f32 %v1705, %v1753
      %v1755 = vpop.f32.mrf.mxu0
      %v1756 = vadd.f32 %v1707, %v1755
      %1757 = vmatmul.bf16.gmra.mxu0 %v679
      %v1758 = vpop.f32.mrf.mxu0
      %v1759 = vadd.f32 %v1710, %v1758
      %v1760 = vpop.f32.mrf.mxu0
      %v1761 = vadd.f32 %v1712, %v1760
      %1762 = vmatmul.bf16.gmra.mxu0 %v691
      %v1763 = vpop.f32.mrf.mxu0
      %v1764 = vadd.f32 %v1715, %v1763
      %v1765 = vpop.f32.mrf.mxu0
      %v1766 = vadd.f32 %v1717, %v1765
      %1767 = vmatmul.bf16.gmra.mxu0 %v703
      %v1768 = vpop.f32.mrf.mxu0
      %v1769 = vadd.f32 %v1720, %v1768
      %v1770 = vpop.f32.mrf.mxu0
      %v1771 = vadd.f32 %v1722, %v1770
      %1772 = vdwg.mxu0
      %1773 = vmatpush.bf16.msra.mxu0 %v1431
      %1774 = vmatpush.bf16.msra.mxu0 %v1430
      %1775 = vmatpush.bf16.msra.mxu0 %v1429
      %1776 = vmatpush.bf16.msra.mxu0 %v1428
      %1777 = vmatpush.bf16.msra.mxu0 %v1427
      %1778 = vmatpush.bf16.msra.mxu0 %v1426
      %1779 = vmatpush.bf16.msra.mxu0 %v1425
      %1780 = vmatpush.bf16.msra.mxu0 %v1424
      %1781 = vmatmul.bf16.gmra.mxu0 %v714
      %v1782 = vpop.f32.mrf.mxu0
      %v1783 = vadd.f32 %v1734, %v1782
      %v1784 = vpop.f32.mrf.mxu0
      %v1785 = vadd.f32 %v1736, %v1784
      %1786 = vmatmul.bf16.gmra.mxu0 %v717
      %v1787 = vpop.f32.mrf.mxu0
      %v1788 = vadd.f32 %v1739, %v1787
      %v1789 = vpop.f32.mrf.mxu0
      %v1790 = vadd.f32 %v1741, %v1789
      %1791 = vmatmul.bf16.gmra.mxu0 %v720
      %v1792 = vpop.f32.mrf.mxu0
      %v1793 = vadd.f32 %v1744, %v1792
      %v1794 = vpop.f32.mrf.mxu0
      %v1795 = vadd.f32 %v1746, %v1794
      %1796 = vmatmul.bf16.gmra.mxu0 %v723
      %v1797 = vpop.f32.mrf.mxu0
      %v1798 = vadd.f32 %v1749, %v1797
      %v1799 = vpop.f32.mrf.mxu0
      %v1800 = vadd.f32 %v1751, %v1799
      %1801 = vmatmul.bf16.gmra.mxu0 %v726
      %v1802 = vpop.f32.mrf.mxu0
      %v1803 = vadd.f32 %v1754, %v1802
      %v1804 = vpop.f32.mrf.mxu0
      %v1805 = vadd.f32 %v1756, %v1804
      %1806 = vmatmul.bf16.gmra.mxu0 %v729
      %v1807 = vpop.f32.mrf.mxu0
      %v1808 = vadd.f32 %v1759, %v1807
      %v1809 = vpop.f32.mrf.mxu0
      %v1810 = vadd.f32 %v1761, %v1809
      %1811 = vmatmul.bf16.gmra.mxu0 %v732
      %v1812 = vpop.f32.mrf.mxu0
      %v1813 = vadd.f32 %v1764, %v1812
      %v1814 = vpop.f32.mrf.mxu0
      %v1815 = vadd.f32 %v1766, %v1814
      %1816 = vmatmul.bf16.gmra.mxu0 %v735
      %v1817 = vpop.f32.mrf.mxu0
      %v1818 = vadd.f32 %v1769, %v1817
      %v1819 = vpop.f32.mrf.mxu0
      %v1820 = vadd.f32 %v1771, %v1819
      %1821 = vdwg.mxu0
      %1822 = vmatpush.bf16.msra.mxu0 %v1439
      %1823 = vmatpush.bf16.msra.mxu0 %v1438
      %1824 = vmatpush.bf16.msra.mxu0 %v1437
      %1825 = vmatpush.bf16.msra.mxu0 %v1436
      %1826 = vmatpush.bf16.msra.mxu0 %v1435
      %1827 = vmatpush.bf16.msra.mxu0 %v1434
      %1828 = vmatpush.bf16.msra.mxu0 %v1433
      %1829 = vmatpush.bf16.msra.mxu0 %v1432
      %1830 = vmatmul.bf16.gmra.mxu0 %v776
      %v1831 = vpop.f32.mrf.mxu0
      %v1832 = vadd.f32 %v1783, %v1831
      %v1833 = vpop.f32.mrf.mxu0
      %v1834 = vadd.f32 %v1785, %v1833
      %1835 = vmatmul.bf16.gmra.mxu0 %v777
      %v1836 = vpop.f32.mrf.mxu0
      %v1837 = vadd.f32 %v1788, %v1836
      %v1838 = vpop.f32.mrf.mxu0
      %v1839 = vadd.f32 %v1790, %v1838
      %1840 = vmatmul.bf16.gmra.mxu0 %v778
      %v1841 = vpop.f32.mrf.mxu0
      %v1842 = vadd.f32 %v1793, %v1841
      %v1843 = vpop.f32.mrf.mxu0
      %v1844 = vadd.f32 %v1795, %v1843
      %1845 = vmatmul.bf16.gmra.mxu0 %v779
      %v1846 = vpop.f32.mrf.mxu0
      %v1847 = vadd.f32 %v1798, %v1846
      %v1848 = vpop.f32.mrf.mxu0
      %v1849 = vadd.f32 %v1800, %v1848
      %1850 = vmatmul.bf16.gmra.mxu0 %v780
      %v1851 = vpop.f32.mrf.mxu0
      %v1852 = vadd.f32 %v1803, %v1851
      %v1853 = vpop.f32.mrf.mxu0
      %v1854 = vadd.f32 %v1805, %v1853
      %1855 = vmatmul.bf16.gmra.mxu0 %v781
      %v1856 = vpop.f32.mrf.mxu0
      %v1857 = vadd.f32 %v1808, %v1856
      %v1858 = vpop.f32.mrf.mxu0
      %v1859 = vadd.f32 %v1810, %v1858
      %1860 = vmatmul.bf16.gmra.mxu0 %v782
      %v1861 = vpop.f32.mrf.mxu0
      %v1862 = vadd.f32 %v1813, %v1861
      %v1863 = vpop.f32.mrf.mxu0
      %v1864 = vadd.f32 %v1815, %v1863
      %1865 = vmatmul.bf16.gmra.mxu0 %v783
      %v1866 = vpop.f32.mrf.mxu0
      %v1867 = vadd.f32 %v1818, %v1866
      %v1868 = vpop.f32.mrf.mxu0
      %v1869 = vadd.f32 %v1820, %v1868
      %1870 = vdwg.mxu0
      %1871 = vmatpush.bf16.msra.mxu0 %v1447
      %1872 = vmatpush.bf16.msra.mxu0 %v1446
      %1873 = vmatpush.bf16.msra.mxu0 %v1445
      %1874 = vmatpush.bf16.msra.mxu0 %v1444
      %1875 = vmatpush.bf16.msra.mxu0 %v1443
      %1876 = vmatpush.bf16.msra.mxu0 %v1442
      %1877 = vmatpush.bf16.msra.mxu0 %v1441
      %1878 = vmatpush.bf16.msra.mxu0 %v1440
      %1879 = vmatmul.bf16.gmra.mxu0 %v827
      %v1880 = vpop.f32.mrf.mxu0
      %v1881 = vadd.f32 %v1832, %v1880
      %v1882 = vpop.f32.mrf.mxu0
      %v1883 = vadd.f32 %v1834, %v1882
      %1884 = vmatmul.bf16.gmra.mxu0 %v839
      %v1885 = vpop.f32.mrf.mxu0
      %v1886 = vadd.f32 %v1837, %v1885
      %v1887 = vpop.f32.mrf.mxu0
      %v1888 = vadd.f32 %v1839, %v1887
      %1889 = vmatmul.bf16.gmra.mxu0 %v851
      %v1890 = vpop.f32.mrf.mxu0
      %v1891 = vadd.f32 %v1842, %v1890
      %v1892 = vpop.f32.mrf.mxu0
      %v1893 = vadd.f32 %v1844, %v1892
      %1894 = vmatmul.bf16.gmra.mxu0 %v863
      %v1895 = vpop.f32.mrf.mxu0
      %v1896 = vadd.f32 %v1847, %v1895
      %v1897 = vpop.f32.mrf.mxu0
      %v1898 = vadd.f32 %v1849, %v1897
      %1899 = vmatmul.bf16.gmra.mxu0 %v875
      %v1900 = vpop.f32.mrf.mxu0
      %v1901 = vadd.f32 %v1852, %v1900
      %v1902 = vpop.f32.mrf.mxu0
      %v1903 = vadd.f32 %v1854, %v1902
      %1904 = vmatmul.bf16.gmra.mxu0 %v887
      %v1905 = vpop.f32.mrf.mxu0
      %v1906 = vadd.f32 %v1857, %v1905
      %v1907 = vpop.f32.mrf.mxu0
      %v1908 = vadd.f32 %v1859, %v1907
      %1909 = vmatmul.bf16.gmra.mxu0 %v899
      %v1910 = vpop.f32.mrf.mxu0
      %v1911 = vadd.f32 %v1862, %v1910
      %v1912 = vpop.f32.mrf.mxu0
      %v1913 = vadd.f32 %v1864, %v1912
      %1914 = vmatmul.bf16.gmra.mxu0 %v911
      %v1915 = vpop.f32.mrf.mxu0
      %v1916 = vadd.f32 %v1867, %v1915
      %v1917 = vpop.f32.mrf.mxu0
      %v1918 = vadd.f32 %v1869, %v1917
      %1919 = vdwg.mxu0
      %1920 = vmatpush.bf16.msra.mxu0 %v1455
      %1921 = vmatpush.bf16.msra.mxu0 %v1454
      %1922 = vmatpush.bf16.msra.mxu0 %v1453
      %1923 = vmatpush.bf16.msra.mxu0 %v1452
      %1924 = vmatpush.bf16.msra.mxu0 %v1451
      %1925 = vmatpush.bf16.msra.mxu0 %v1450
      %1926 = vmatpush.bf16.msra.mxu0 %v1449
      %1927 = vmatpush.bf16.msra.mxu0 %v1448
      %1928 = vmatmul.bf16.gmra.mxu0 %v922
      %v1929 = vpop.f32.mrf.mxu0
      %v1930 = vadd.f32 %v1881, %v1929
      %v1931 = vpop.f32.mrf.mxu0
      %v1932 = vadd.f32 %v1883, %v1931
      %1933 = vmatmul.bf16.gmra.mxu0 %v925
      %v1934 = vpop.f32.mrf.mxu0
      %v1935 = vadd.f32 %v1886, %v1934
      %v1936 = vpop.f32.mrf.mxu0
      %v1937 = vadd.f32 %v1888, %v1936
      %1938 = vmatmul.bf16.gmra.mxu0 %v928
      %v1939 = vpop.f32.mrf.mxu0
      %v1940 = vadd.f32 %v1891, %v1939
      %v1941 = vpop.f32.mrf.mxu0
      %v1942 = vadd.f32 %v1893, %v1941
      %1943 = vmatmul.bf16.gmra.mxu0 %v931
      %v1944 = vpop.f32.mrf.mxu0
      %v1945 = vadd.f32 %v1896, %v1944
      %v1946 = vpop.f32.mrf.mxu0
      %v1947 = vadd.f32 %v1898, %v1946
      %1948 = vmatmul.bf16.gmra.mxu0 %v934
      %v1949 = vpop.f32.mrf.mxu0
      %v1950 = vadd.f32 %v1901, %v1949
      %v1951 = vpop.f32.mrf.mxu0
      %v1952 = vadd.f32 %v1903, %v1951
      %1953 = vmatmul.bf16.gmra.mxu0 %v937
      %v1954 = vpop.f32.mrf.mxu0
      %v1955 = vadd.f32 %v1906, %v1954
      %v1956 = vpop.f32.mrf.mxu0
      %v1957 = vadd.f32 %v1908, %v1956
      %1958 = vmatmul.bf16.gmra.mxu0 %v940
      %v1959 = vpop.f32.mrf.mxu0
      %v1960 = vadd.f32 %v1911, %v1959
      %v1961 = vpop.f32.mrf.mxu0
      %v1962 = vadd.f32 %v1913, %v1961
      %1963 = vmatmul.bf16.gmra.mxu0 %v943
      %v1964 = vpop.f32.mrf.mxu0
      %v1965 = vadd.f32 %v1916, %v1964
      %v1966 = vpop.f32.mrf.mxu0
      %v1967 = vadd.f32 %v1918, %v1966
      %1968 = vdwg.mxu0
      %v1969 = vld [vmem:[%s2] sm:$0x1]
      %v1970 = vld [vmem:[%s2 + $0x1] sm:$0x1]
      %v1971 = vperm.slane %v1969, 0
      %v1972 = vmul.f32 %v1930, %v1971
      %v1973 = vmul.f32 %v1932, %v1971
      %v1974 = vmul.f32 %v1935, %v1971
      %v1975 = vmul.f32 %v1937, %v1971
      %v1976 = vmul.f32 %v1940, %v1971
      %v1977 = vmul.f32 %v1942, %v1971
      %v1978 = vmul.f32 %v1945, %v1971
      %v1979 = vmul.f32 %v1947, %v1971
      %v1980 = vmul.f32 %v1950, %v1971
      %v1981 = vmul.f32 %v1952, %v1971
      %v1982 = vmul.f32 %v1955, %v1971
      %v1983 = vmul.f32 %v1957, %v1971
      %v1984 = vmul.f32 %v1960, %v1971
      %v1985 = vmul.f32 %v1962, %v1971
      %v1986 = vmul.f32 %v1965, %v1971
      %v1987 = vmul.f32 %v1967, %v1971
      %v1988 = vperm.slane %v1970, 0
      %v1989 = vadd.f32 %v1972, %v1988
      %v1990 = vadd.f32 %v1973, %v1988
      %v1991 = vadd.f32 %v1974, %v1988
      %v1992 = vadd.f32 %v1975, %v1988
      %v1993 = vadd.f32 %v1976, %v1988
      %v1994 = vadd.f32 %v1977, %v1988
      %v1995 = vadd.f32 %v1978, %v1988
      %v1996 = vadd.f32 %v1979, %v1988
      %v1997 = vadd.f32 %v1980, %v1988
      %v1998 = vadd.f32 %v1981, %v1988
      %v1999 = vadd.f32 %v1982, %v1988
      %v2000 = vadd.f32 %v1983, %v1988
      %v2001 = vadd.f32 %v1984, %v1988
      %v2002 = vadd.f32 %v1985, %v1988
      %v2003 = vadd.f32 %v1986, %v1988
      %v2004 = vadd.f32 %v1987, %v1988
      %v2005 = vsub.f32 0.0, %v1989
      %v2006 = vsub.f32 0.0, %v1990
      %v2007 = vsub.f32 0.0, %v1991
      %v2008 = vsub.f32 0.0, %v1992
      %v2009 = vsub.f32 0.0, %v1993
      %v2010 = vsub.f32 0.0, %v1994
      %v2011 = vsub.f32 0.0, %v1995
      %v2012 = vsub.f32 0.0, %v1996
      %v2013 = vsub.f32 0.0, %v1997
      %v2014 = vsub.f32 0.0, %v1998
      %v2015 = vsub.f32 0.0, %v1999
      %v2016 = vsub.f32 0.0, %v2000
      %v2017 = vsub.f32 0.0, %v2001
      %v2018 = vsub.f32 0.0, %v2002
      %v2019 = vsub.f32 0.0, %v2003
      %v2020 = vsub.f32 0.0, %v2004
      %v2021 = vmul.f32 %v2005, 1.442695
      %v2022 = vpow.pop %v2021
      %v2023 = vmul.f32 %v2006, 1.442695
      %v2024 = vpow.pop %v2023
      %v2025 = vmul.f32 %v2007, 1.442695
      %v2026 = vpow.pop %v2025
      %v2027 = vmul.f32 %v2008, 1.442695
      %v2028 = vpow.pop %v2027
      %v2029 = vmul.f32 %v2009, 1.442695
      %v2030 = vpow.pop %v2029
      %v2031 = vmul.f32 %v2010, 1.442695
      %v2032 = vpow.pop %v2031
      %v2033 = vmul.f32 %v2011, 1.442695
      %v2034 = vpow.pop %v2033
      %v2035 = vmul.f32 %v2012, 1.442695
      %v2036 = vpow.pop %v2035
      %v2037 = vmul.f32 %v2013, 1.442695
      %v2038 = vpow.pop %v2037
      %v2039 = vmul.f32 %v2014, 1.442695
      %v2040 = vpow.pop %v2039
      %v2041 = vmul.f32 %v2015, 1.442695
      %v2042 = vpow.pop %v2041
      %v2043 = vmul.f32 %v2016, 1.442695
      %v2044 = vpow.pop %v2043
      %v2045 = vmul.f32 %v2017, 1.442695
      %v2046 = vpow.pop %v2045
      %v2047 = vmul.f32 %v2018, 1.442695
      %v2048 = vpow.pop %v2047
      %v2049 = vmul.f32 %v2019, 1.442695
      %v2050 = vpow.pop %v2049
      %v2051 = vmul.f32 %v2020, 1.442695
      %v2052 = vpow.pop %v2051
      %v2053 = vadd.f32 %v2022, 1.0
      %v2054 = vadd.f32 %v2024, 1.0
      %v2055 = vadd.f32 %v2026, 1.0
      %v2056 = vadd.f32 %v2028, 1.0
      %v2057 = vadd.f32 %v2030, 1.0
      %v2058 = vadd.f32 %v2032, 1.0
      %v2059 = vadd.f32 %v2034, 1.0
      %v2060 = vadd.f32 %v2036, 1.0
      %v2061 = vadd.f32 %v2038, 1.0
      %v2062 = vadd.f32 %v2040, 1.0
      %v2063 = vadd.f32 %v2042, 1.0
      %v2064 = vadd.f32 %v2044, 1.0
      %v2065 = vadd.f32 %v2046, 1.0
      %v2066 = vadd.f32 %v2048, 1.0
      %v2067 = vadd.f32 %v2050, 1.0
      %v2068 = vadd.f32 %v2052, 1.0
      %v2069 = vrcp.pop %v2053
      %v2070 = vrcp.pop %v2054
      %v2071 = vrcp.pop %v2055
      %v2072 = vrcp.pop %v2056
      %v2073 = vrcp.pop %v2057
      %v2074 = vrcp.pop %v2058
      %v2075 = vrcp.pop %v2059
      %v2076 = vrcp.pop %v2060
      %v2077 = vrcp.pop %v2061
      %v2078 = vrcp.pop %v2062
      %v2079 = vrcp.pop %v2063
      %v2080 = vrcp.pop %v2064
      %v2081 = vrcp.pop %v2065
      %v2082 = vrcp.pop %v2066
      %v2083 = vrcp.pop %v2067
      %v2084 = vrcp.pop %v2068
      %v2085 = vmul.f32 %v1989, %v2069
      %v2086 = vmul.f32 %v1990, %v2070
      %v2087 = vmul.f32 %v1991, %v2071
      %v2088 = vmul.f32 %v1992, %v2072
      %v2089 = vmul.f32 %v1993, %v2073
      %v2090 = vmul.f32 %v1994, %v2074
      %v2091 = vmul.f32 %v1995, %v2075
      %v2092 = vmul.f32 %v1996, %v2076
      %v2093 = vmul.f32 %v1997, %v2077
      %v2094 = vmul.f32 %v1998, %v2078
      %v2095 = vmul.f32 %v1999, %v2079
      %v2096 = vmul.f32 %v2000, %v2080
      %v2097 = vmul.f32 %v2001, %v2081
      %v2098 = vmul.f32 %v2002, %v2082
      %v2099 = vmul.f32 %v2003, %v2083
      %v2100 = vmul.f32 %v2004, %v2084
      %v2101 = vadd.f32 %v2085, %v2086
      %v2102 = vadd.f32 %v2101, %v2087
      %v2103 = vadd.f32 %v2102, %v2088
      %v2104 = vadd.f32 %v2103, %v2089
      %v2105 = vadd.f32 %v2104, %v2090
      %v2106 = vadd.f32 %v2105, %v2091
      %v2107 = vadd.f32 %v2106, %v2092
      %v2108 = vadd.f32 %v2107, %v2093
      %v2109 = vadd.f32 %v2108, %v2094
      %v2110 = vadd.f32 %v2109, %v2095
      %v2111 = vadd.f32 %v2110, %v2096
      %v2112 = vadd.f32 %v2111, %v2097
      %v2113 = vadd.f32 %v2112, %v2098
      %v2114 = vadd.f32 %v2113, %v2099
      %v2115 = vadd.f32 %v2114, %v2100
      %v2116 = vrot.slane %v2115, 4
      %v2117 = vadd.f32 %v2115, %v2116
      %v2118 = vrot.slane %v2117, 2
      %v2119 = vadd.f32 %v2117, %v2118
      %v2120 = vrot.slane %v2119, 1
      %v2121 = vadd.f32 %v2119, %v2120
      %2122 = vst [vmem:[%s241] sm:$0x1] %v2121
      %v2123 = vpack.c.bf16 %v2085, %v2085
      %v2124 = vpack.c.bf16 %v2086, %v2086
      %v2125 = vpack.c.bf16 %v2087, %v2087
      %v2126 = vpack.c.bf16 %v2088, %v2088
      %v2127 = vpack.c.bf16 %v2089, %v2089
      %v2128 = vpack.c.bf16 %v2090, %v2090
      %v2129 = vpack.c.bf16 %v2091, %v2091
      %v2130 = vpack.c.bf16 %v2092, %v2092
      %v2131 = vpack.c.bf16 %v2093, %v2093
      %v2132 = vpack.c.bf16 %v2094, %v2094
      %v2133 = vpack.c.bf16 %v2095, %v2095
      %v2134 = vpack.c.bf16 %v2096, %v2096
      %v2135 = vpack.c.bf16 %v2097, %v2097
      %v2136 = vpack.c.bf16 %v2098, %v2098
      %v2137 = vpack.c.bf16 %v2099, %v2099
      %v2138 = vpack.c.bf16 %v2100, %v2100
      %2139 = vst [vmem:[%s233] sm:$0xf] %v2123
      %2140 = vst [vmem:[%s233 + $0x4] sm:$0xf] %v2124
      %2141 = vst [vmem:[%s233 + $0x8] sm:$0xf] %v2125
      %2142 = vst [vmem:[%s233 + $0xc] sm:$0xf] %v2126
      %2143 = vst [vmem:[%s233 + $0x10] sm:$0xf] %v2127
      %2144 = vst [vmem:[%s233 + $0x14] sm:$0xf] %v2128
      %2145 = vst [vmem:[%s233 + $0x18] sm:$0xf] %v2129
      %2146 = vst [vmem:[%s233 + $0x1c] sm:$0xf] %v2130
      %2147 = vst [vmem:[%s233 + $0x20] sm:$0xf] %v2131
      %2148 = vst [vmem:[%s233 + $0x24] sm:$0xf] %v2132
      %2149 = vst [vmem:[%s233 + $0x28] sm:$0xf] %v2133
      %2150 = vst [vmem:[%s233 + $0x2c] sm:$0xf] %v2134
      %2151 = vst [vmem:[%s233 + $0x30] sm:$0xf] %v2135
      %2152 = vst [vmem:[%s233 + $0x34] sm:$0xf] %v2136
      %2153 = vst [vmem:[%s233 + $0x38] sm:$0xf] %v2137
      %2154 = vst [vmem:[%s233 + $0x3c] sm:$0xf] %v2138
      %s2155 = smul.u32 8, %s21
      %p2156 = scmp.lt.s32.totalorder %s20, 1
      %s2157 = scalar_select %p2156, %s20, 1
      %p2158 = scmp.lt.s32.totalorder %s2155, 15
      %s2159 = scalar_select %p2158, %s2155, 15
      %s2160 = smul.addr %s2159, 2
      %s2161 = smul.addr %s2157, 32
      %s2162 = sadd.s32 %s2160, %s2161
      %s2163 = smul.addr %s2162, 4
      %s2164 = scalar_lea.vmem %s3, %s2163
      %p2165 = scmp.lt.s32.totalorder %s20, 1
      %s2166 = scalar_select %p2165, %s20, 1
      %p2167 = scmp.lt.s32.totalorder %s21, 1
      %s2168 = scalar_select %p2167, %s21, 1
      %s2169 = smul.addr %s2166, 2
      %s2170 = sadd.s32 %s2168, %s2169
      %s2171 = scalar_lea.vmem %s4, %s2170
      // Predicated region
      $region33: #{_lambda_.2} parent=31 // pred_check
        %p2172 = pneg %p116
      $region34: #{_lambda_.2} parent=31 // pred_check_branch
        %2174 = sbr.rel (%p2172) target = $region36
      $region35: #{_lambda_.2} parent=31 // pred_region
        %s2175 = smul.u32 8, %s21
      $region36: #{_lambda_.2} parent=31 // pred_fallthru
        _
      // Predicated region
      $region37: #{_lambda_.2} parent=31 // pred_check
        %p2176 = pneg %p144
      $region38: #{_lambda_.2} parent=31 // pred_check_branch
        %2178 = sbr.rel (%p2176) target = $region40
      $region39: #{_lambda_.2} parent=31 // pred_region
        _
      $region40: #{_lambda_.2} parent=31 // pred_fallthru
        _
    $region32: #{_lambda_.2} parent=5 // pred_fallthru
      _
    %p2179 = scmp.le.s32.totalorder 2, %s11
    // Predicated region
    $region41: #{_lambda_.2} parent=5 // pred_check
      %p2180 = pneg %p2179
    $region42: #{_lambda_.2} parent=5 // pred_check_branch
      %2182 = sbr.rel (%p2180) target = $region44
    $region43: #{_lambda_.2} parent=5 // pred_region
      %s2183 = ssub.s32 %s11, 2
      // Predicated region
      $region45: #{_lambda_.2} parent=43 // pred_check
        %p2184 = pneg %p122
      $region46: #{_lambda_.2} parent=43 // pred_check_branch
        %2186 = sbr.rel (%p2184) target = $region48
      $region47: #{_lambda_.2} parent=43 // pred_region
        %s2187 = smul.u32 8, %s23
        %p2188 = scmp.lt.s32.totalorder %s22, 1
        %s2189 = scalar_select %p2188, %s22, 1
        %p2190 = scmp.lt.s32.totalorder %s2187, 15
        %s2191 = scalar_select %p2190, %s2187, 15
        %s2192 = smul.addr %s2191, 2
        %s2193 = smul.addr %s2189, 32
        %s2194 = sadd.s32 %s2192, %s2193
        %s2195 = smul.addr %s2194, 4
        %s2196 = scalar_lea.vmem %s3, %s2195
      $region48: #{_lambda_.2} parent=43 // pred_fallthru
        _
      // Predicated region
      $region49: #{_lambda_.2} parent=43 // pred_check
        %p2197 = pneg %p150
      $region50: #{_lambda_.2} parent=43 // pred_check_branch
        %2199 = sbr.rel (%p2197) target = $region52
      $region51: #{_lambda_.2} parent=43 // pred_region
        %p2200 = scmp.lt.s32.totalorder %s22, 1
        %s2201 = scalar_select %p2200, %s22, 1
        %p2202 = scmp.lt.s32.totalorder %s23, 1
        %s2203 = scalar_select %p2202, %s23, 1
        %s2204 = smul.addr %s2201, 2
        %s2205 = sadd.s32 %s2203, %s2204
        %s2206 = scalar_lea.vmem %s4, %s2205
      $region52: #{_lambda_.2} parent=43 // pred_fallthru
        _
    $region44: #{_lambda_.2} parent=5 // pred_fallthru
      _
  $region6: #{_lambda_.2} parent=0 // loop_footer
    %s15 = sadd.s32 1, %s11
  $region7: #{_lambda_.2} parent=0 // loop_footer_branch
    %10 = sbr.rel target = $region3
  $region8: #{_lambda_.2} parent=0 // loop_exit
    _

</llo_original>
